<compile_context>
chip_gen: v7x
topology: tpu7x:2x2x1
jax: 0.10.0
libtpu: 0.0.40
codegen_flags: <defaults>
</compile_context>

<pallas_src>
import functools

import jax
import jax.numpy as jnp
from jax import lax
from jax.experimental import pallas as pl
from jax.experimental.pallas import tpu as pltpu

C1, C2, C3 = 32, 64, 128   # conv channel widths of the module
CW = 128                   # lane-aligned channel width used for all activations


def _round_up(x, m):
    return -(-x // m) * m


def _conv3_same(x, w_ref, b_ref, seq_len):
    """'same' conv (kernel 3, pad 1) over flattened contiguous sequences of length seq_len.

    x:     (R, Cin_pad) activations, R = B * seq_len (sequences contiguous along rows).
    w_ref: (Cin_pad, 3*CW) fused taps; each tap block starts at a 128-lane boundary
           (torch tap k pairs with x[t-1+k]); unused rows/cols are zero.
    b_ref: (1, CW) zero-padded bias.
    Returns (R, CW) float32 (channels >= real Cout are exactly zero).
    """
    rows = x.shape[0]
    cw = b_ref.shape[-1]
    # single wide MXU pass for all three taps; slices below are vreg-aligned (0/128/256)
    y = jnp.dot(x.astype(w_ref.dtype), w_ref[...], preferred_element_type=jnp.float32)
    a = y[:, :cw]            # x[t] @ W_k0 -> consumed at output position t+1
    c = y[:, cw:2 * cw]      # x[t] @ W_k1 -> consumed at output position t
    e = y[:, 2 * cw:]        # x[t] @ W_k2 -> consumed at output position t-1
    # narrow per-sequence-local row index; broadcasts against (rows, CW) inside the wheres
    local = lax.broadcasted_iota(jnp.int32, (rows, 1), 0) % seq_len
    left = jnp.where(local == 0, 0.0, pltpu.roll(a, shift=1, axis=0))
    right = jnp.where(local == seq_len - 1, 0.0, pltpu.roll(e, shift=rows - 1, axis=0))
    return left + c + right + b_ref[...]


def _maxpool2_compact(h, s_ref):
    """MaxPool1d(kernel=2, stride=2) with row compaction.

    max(h[i], h[i+1]) via a single XLU roll, then one stride-2 sublane read of the even rows.
    Pairs never straddle sequence boundaries (sequence lengths are even).
    """
    rows = h.shape[0]
    s_ref[...] = jnp.maximum(h, pltpu.roll(h, shift=rows - 1, axis=0))
    return s_ref[pl.ds(0, rows // 2, stride=2), :]


def _seq_max_compact(h, s_ref, n_seq):
    """Per-sequence max over time for contiguous length-L sequences -> (n_seq, CW).

    Log-depth halving (roll + max + stride-2 compaction) while the per-sequence length is
    even; small linear fold for any odd remainder.
    """
    rows = h.shape[0]
    L = rows // n_seq
    while L > 1 and L % 2 == 0:
        s_ref[pl.ds(0, rows), :] = jnp.maximum(h, pltpu.roll(h, shift=rows - 1, axis=0))
        rows //= 2
        L //= 2
        h = s_ref[pl.ds(0, rows, stride=2), :]
    if L > 1:
        s_ref[pl.ds(0, rows), :] = h
        h = s_ref[pl.ds(0, n_seq, stride=L), :]
        for j in range(1, L):   # small odd remainder only
            h = jnp.maximum(h, s_ref[pl.ds(j, n_seq, stride=L), :])
    return h


def cnn_kernel(tok_ref, emb_ref, w1_ref, b1_ref, w2_ref, b2_ref, w3_ref, b3_ref,
               wfc_ref, bfc_ref, out_ref, s1_ref, s2_ref, s3_ref, *, seq_len, block_batch):
    T = seq_len
    rows = tok_ref.shape[0]                                       # block_batch * T

    # in-kernel embedding lookup: one-hot (rows, V_pad) @ (V_pad, D_pad) MXU matmul
    ids = tok_ref[...]                                            # (rows, 1) int32
    vocab_iota = lax.broadcasted_iota(jnp.int32, (rows, emb_ref.shape[0]), 1)
    one_hot = jnp.where(ids == vocab_iota, 1.0, 0.0).astype(emb_ref.dtype)
    x = jnp.dot(one_hot, emb_ref[...], preferred_element_type=jnp.float32)   # (rows, D_pad)

    # conv1 + relu + pool(2) -> (rows/2, 128)
    h = jax.nn.relu(_conv3_same(x, w1_ref, b1_ref, T))
    h = _maxpool2_compact(h, s1_ref)

    # conv2 + relu + pool(2) -> (rows/4, 128)
    h = jax.nn.relu(_conv3_same(h, w2_ref, b2_ref, T // 2))
    h = _maxpool2_compact(h, s2_ref)

    # conv3 + relu           -> (rows/4, 128)
    h = jax.nn.relu(_conv3_same(h, w3_ref, b3_ref, T // 4))

    # global max over time -> (block_batch, 128), then fused (padded) Linear
    feat = _seq_max_compact(h, s3_ref, block_batch)
    logits = jnp.dot(feat.astype(wfc_ref.dtype), wfc_ref[...],
                     preferred_element_type=jnp.float32) + bfc_ref[...]
    out_ref[...] = logits                                         # lane-dense (block_batch, 128)


def cnn_forward(X, params, *, block_batch=None, matmul_dtype=jnp.bfloat16):
    """X: int32 (N, T) token ids.  Returns logits (N, K).

    matmul_dtype=jnp.bfloat16 (default) keeps f32 accumulation; pass jnp.float32 for exact
    parity with an f32 reference.
    """
    V, D = params["embed"].shape
    K = params["bfc"].shape[-1]
    N, T = X.shape
    assert T % 4 == 0, "sequence length must be divisible by 4 (two MaxPool1d(2))"

    V_pad = _round_up(V, 128)
    D_pad = _round_up(D, 128)
    assert V_pad <= 2048, "one-hot embedding path only sized for small vocabularies"

    # vocab table, zero-padded to (V_pad, D_pad), resident in VMEM across the whole grid
    emb_p = jnp.zeros((V_pad, D_pad), matmul_dtype).at[:V, :D].set(
        params["embed"].astype(matmul_dtype))

    # fused conv taps: (3, Cin, Cout) -> (Cin_pad, 3*CW); each tap block 128-lane aligned
    def fuse_pad(w, cin_pad):
        k, cin, cout = w.shape
        out = jnp.zeros((cin_pad, k * CW), matmul_dtype)
        for j in range(k):
            out = out.at[:cin, j * CW:j * CW + cout].set(w[j].astype(matmul_dtype))
        return out

    w1s = fuse_pad(params["w1"], D_pad)
    w2s = fuse_pad(params["w2"], CW)
    w3s = fuse_pad(params["w3"], CW)

    def pad_bias(b):
        return jnp.zeros((1, CW), jnp.float32).at[0, :b.shape[0]].set(b.astype(jnp.float32))

    b1p, b2p, b3p = pad_bias(params["b1"]), pad_bias(params["b2"]), pad_bias(params["b3"])

    # fused final Linear, padded to lane-dense (128, 128) / (1, 128)
    wfc_p = jnp.zeros((CW, CW), matmul_dtype).at[:C3, :K].set(params["wfc"].astype(matmul_dtype))
    bfc_p = jnp.zeros((1, CW), jnp.float32).at[0, :K].set(params["bfc"].astype(jnp.float32))

    # Batch blocking: target >= 512 matmul rows per grid step (pipeline amortization), but keep
    # n_blocks >= 2 when N allows so both v7x TensorCores get work.  Multiple of 8 for
    # sublane-aligned strided reads and the lane-dense output block.
    if block_batch is None:
        block_batch = 8 * max(1, pl.cdiv(512, 8 * T))
        block_batch = min(block_batch, 8 * pl.cdiv(N, 8))
        if N > 8:
            block_batch = min(block_batch, max(8, 8 * ((N // 2) // 8)))
    assert block_batch % 8 == 0, "block_batch must be a multiple of 8"
    n_blocks = pl.cdiv(N, block_batch)
    n_pad = n_blocks * block_batch
    rows = block_batch * T

    # pad the cheap int32 token ids (4 B/token) rather than (N*T, D) embeddings
    tok = X.reshape(-1).astype(jnp.int32)
    if n_pad != N:
        tok = jnp.concatenate([tok, jnp.zeros(((n_pad - N) * T,), jnp.int32)])
    tok = tok.reshape(n_pad * T, 1)

    # explicit VMEM budget (v7x: 64 MiB physical / 32 MiB scoped default; v5e: 16 MiB default)
    bpe = jnp.dtype(matmul_dtype).itemsize
    weight_bytes = ((emb_p.size + w1s.size + w2s.size + w3s.size + wfc_p.size) * bpe
                    + (b1p.size + b2p.size + b3p.size + bfc_p.size) * 4)
    est = (2 * rows * 512                            # token-id block (lane-padded), x2 buffers
           + 2 * block_batch * 512                   # logits output block, x2 buffers
           + (rows + rows // 2 + rows // 4) * 512    # pool / global-max scratch
           + 2 * weight_bytes)
    vmem_limit = int(min(60 << 20, max(16 << 20, 2 * est)))

    kernel = functools.partial(cnn_kernel, seq_len=T, block_batch=block_batch)

    logits = pl.pallas_call(
        kernel,
        out_shape=jax.ShapeDtypeStruct((n_pad, CW), jnp.float32),
        grid_spec=pltpu.PrefetchScalarGridSpec(
            num_scalar_prefetch=0,
            grid=(n_blocks,),
            in_specs=[
                pl.BlockSpec((rows, 1), lambda n: (n, 0)),       # this block's token ids
                pl.BlockSpec(emb_p.shape, lambda n: (0, 0)),
                pl.BlockSpec(w1s.shape, lambda n: (0, 0)),
                pl.BlockSpec(b1p.shape, lambda n: (0, 0)),
                pl.BlockSpec(w2s.shape, lambda n: (0, 0)),
                pl.BlockSpec(b2p.shape, lambda n: (0, 0)),
                pl.BlockSpec(w3s.shape, lambda n: (0, 0)),
                pl.BlockSpec(b3p.shape, lambda n: (0, 0)),
                pl.BlockSpec(wfc_p.shape, lambda n: (0, 0)),
                pl.BlockSpec(bfc_p.shape, lambda n: (0, 0)),
            ],
            out_specs=pl.BlockSpec((block_batch, CW), lambda n: (n, 0)),
            scratch_shapes=[
                pltpu.VMEM((rows, CW), jnp.float32),
                pltpu.VMEM((rows // 2, CW), jnp.float32),
                pltpu.VMEM((rows // 4, CW), jnp.float32),
            ],
        ),
        compiler_params=pltpu.CompilerParams(
            dimension_semantics=("parallel",),       # batch blocks independent (v7x megacore)
            vmem_limit_bytes=vmem_limit),
    )(tok, emb_p, w1s, b1p, w2s, b2p, w3s, b3p, wfc_p, bfc_p)

    return logits[:N, :K]


def reference_forward(X, params):
    """Pure-JAX f32 reference matching the PyTorch module semantics (NCW conv)."""
    emb = params["embed"][X].astype(jnp.float32)                       # (N, T, D)
    h = jnp.transpose(emb, (0, 2, 1))                                  # (N, D, T)

    def conv(h, w, b):  # w: (3, Cin, Cout) -> torch layout (Cout, Cin, 3)
        rhs = jnp.transpose(w, (2, 1, 0))
        y = lax.conv_general_dilated(h, rhs, (1,), [(1, 1)],
                                     dimension_numbers=("NCH", "OIH", "NCH"))
        return y + b[None, :, None]

    def pool(h):
        N_, C_, L_ = h.shape
        return jnp.max(h.reshape(N_, C_, L_ // 2, 2), axis=-1)

    h = pool(jax.nn.relu(conv(h, params["w1"], params["b1"])))
    h = pool(jax.nn.relu(conv(h, params["w2"], params["b2"])))
    h = jax.nn.relu(conv(h, params["w3"], params["b3"]))
    feat = jnp.max(h, axis=-1)                                         # (N, 128)
    return feat @ params["wfc"] + params["bfc"]


def init_params(key, V, D, K):
    ks = jax.random.split(key, 9)
    f32 = jnp.float32
    return {
        "embed": jax.random.normal(ks[0], (V, D), f32) * 0.1,
        "w1": jax.random.normal(ks[1], (3, D, 32), f32) * 0.1,
        "b1": jax.random.normal(ks[2], (32,), f32) * 0.1,
        "w2": jax.random.normal(ks[3], (3, 32, 64), f32) * 0.1,
        "b2": jax.random.normal(ks[4], (64,), f32) * 0.1,
        "w3": jax.random.normal(ks[5], (3, 64, 128), f32) * 0.1,
        "b3": jax.random.normal(ks[6], (128,), f32) * 0.1,
        "wfc": jax.random.normal(ks[7], (128, K), f32) * 0.1,
        "bfc": jax.random.normal(ks[8], (K,), f32) * 0.1,
    }


if __name__ == "__main__":
    V, D, K = 50, 32, 8      # vocab, embed_dim, n_outputs
    N, T = 16, 16            # batch, sequence length (divisible by 4 for the two pools)

    key = jax.random.PRNGKey(0)
    pkey, xkey = jax.random.split(key)
    params = init_params(pkey, V, D, K)
    X = jax.random.randint(xkey, (N, T), 0, V, dtype=jnp.int32)

    out = cnn_forward(X, params)     # auto block_batch -> 8, i.e. 2 grid steps; bf16 matmuls
    out = jax.block_until_ready(out)

    ref = reference_forward(X, params)
    assert out.shape == (N, K)
    assert jnp.allclose(out, ref, atol=2e-2, rtol=2e-2), (out, ref)

    print("KERNEL_OK")
</pallas_src>

<mosaic_0001>
module attributes {stable_mosaic.version = 11 : i64} {
  func.func @cnn_kernel(%arg0: i32, %arg1: memref<128x1xi32, #tpu.memory_space<vmem>>, %arg2: memref<128x128xbf16, #tpu.memory_space<vmem>>, %arg3: memref<128x384xbf16, #tpu.memory_space<vmem>>, %arg4: memref<1x128xf32, #tpu.memory_space<vmem>>, %arg5: memref<128x384xbf16, #tpu.memory_space<vmem>>, %arg6: memref<1x128xf32, #tpu.memory_space<vmem>>, %arg7: memref<128x384xbf16, #tpu.memory_space<vmem>>, %arg8: memref<1x128xf32, #tpu.memory_space<vmem>>, %arg9: memref<128x128xbf16, #tpu.memory_space<vmem>>, %arg10: memref<1x128xf32, #tpu.memory_space<vmem>>, %arg11: memref<8x128xf32, #tpu.memory_space<vmem>>, %arg12: memref<128x128xf32, #tpu.memory_space<vmem>>, %arg13: memref<64x128xf32, #tpu.memory_space<vmem>>, %arg14: memref<32x128xf32, #tpu.memory_space<vmem>>) attributes {dimension_semantics = [#tpu.dimension_semantics<parallel>], iteration_bounds = array<i64: 2>, scalar_prefetch = 0 : i64, scratch_operands = 3 : i64, tpu.core_type = #tpu.core_type<tc>, window_params = [{transform_indices = @transform_0, window_bounds = array<i64: 128, 1>}, {pipeline_mode = #tpu.pipeline_mode<synchronous>, transform_indices = @transform_1, window_bounds = array<i64: 128, 128>}, {pipeline_mode = #tpu.pipeline_mode<synchronous>, transform_indices = @transform_2, window_bounds = array<i64: 128, 384>}, {pipeline_mode = #tpu.pipeline_mode<synchronous>, transform_indices = @transform_3, window_bounds = array<i64: 1, 128>}, {pipeline_mode = #tpu.pipeline_mode<synchronous>, transform_indices = @transform_4, window_bounds = array<i64: 128, 384>}, {pipeline_mode = #tpu.pipeline_mode<synchronous>, transform_indices = @transform_5, window_bounds = array<i64: 1, 128>}, {pipeline_mode = #tpu.pipeline_mode<synchronous>, transform_indices = @transform_6, window_bounds = array<i64: 128, 384>}, {pipeline_mode = #tpu.pipeline_mode<synchronous>, transform_indices = @transform_7, window_bounds = array<i64: 1, 128>}, {pipeline_mode = #tpu.pipeline_mode<synchronous>, transform_indices = @transform_8, window_bounds = array<i64: 128, 128>}, {pipeline_mode = #tpu.pipeline_mode<synchronous>, transform_indices = @transform_9, window_bounds = array<i64: 1, 128>}, {transform_indices = @transform_10, window_bounds = array<i64: 8, 128>}]} {
    %c0 = arith.constant 0 : index
    %c0_0 = arith.constant 0 : index
    %0 = vector.load %arg1[%c0, %c0_0] : memref<128x1xi32, #tpu.memory_space<vmem>>, vector<128x1xi32>
    %1 = tpu.iota {dimensions = array<i32: 1>} : vector<128x128xi32>
    %2 = vector.broadcast %0 : vector<128x1xi32> to vector<128x128xi32>
    %3 = arith.cmpi eq, %2, %1 : vector<128x128xi32>
    %cst = arith.constant 1.000000e+00 : f32
    %cst_1 = arith.constant 0.000000e+00 : f32
    %4 = vector.broadcast %cst : f32 to vector<128x128xf32>
    %5 = vector.broadcast %cst_1 : f32 to vector<128x128xf32>
    %6 = arith.select %3, %4, %5 : vector<128x128xi1>, vector<128x128xf32>
    %7 = arith.truncf %6 : vector<128x128xf32> to vector<128x128xbf16>
    %c0_2 = arith.constant 0 : index
    %c0_3 = arith.constant 0 : index
    %8 = vector.load %arg2[%c0_2, %c0_3] : memref<128x128xbf16, #tpu.memory_space<vmem>>, vector<128x128xbf16>
    %cst_4 = arith.constant dense<0.000000e+00> : vector<128x128xf32>
    %9 = tpu.matmul %7, %8, %cst_4 {dimension_numbers = #tpu.dot_dimension_numbers<[1], [0], [0], [1], [0, 0, 1, 1], [], []>} : vector<128x128xbf16>, vector<128x128xbf16>, vector<128x128xf32> -> vector<128x128xf32>
    %10 = arith.truncf %9 : vector<128x128xf32> to vector<128x128xbf16>
    %c0_5 = arith.constant 0 : index
    %c0_6 = arith.constant 0 : index
    %11 = vector.load %arg3[%c0_5, %c0_6] : memref<128x384xbf16, #tpu.memory_space<vmem>>, vector<128x384xbf16>
    %cst_7 = arith.constant dense<0.000000e+00> : vector<128x384xf32>
    %12 = tpu.matmul %10, %11, %cst_7 {dimension_numbers = #tpu.dot_dimension_numbers<[1], [0], [0], [1], [0, 0, 1, 1], [], []>} : vector<128x128xbf16>, vector<128x384xbf16>, vector<128x384xf32> -> vector<128x384xf32>
    %13 = vector.extract_strided_slice %12 {offsets = [0, 0], sizes = [128, 128], strides = [1, 1]} : vector<128x384xf32> to vector<128x128xf32>
    %14 = vector.extract_strided_slice %12 {offsets = [0, 128], sizes = [128, 128], strides = [1, 1]} : vector<128x384xf32> to vector<128x128xf32>
    %15 = vector.extract_strided_slice %12 {offsets = [0, 256], sizes = [128, 128], strides = [1, 1]} : vector<128x384xf32> to vector<128x128xf32>
    %16 = tpu.iota {dimensions = array<i32: 0>} : vector<128x1xi32>
    %c16_i32 = arith.constant 16 : i32
    %c0_i32 = arith.constant 0 : i32
    %17 = arith.cmpi eq, %c16_i32, %c0_i32 : i32
    %c1_i32 = arith.constant 1 : i32
    %18 = arith.select %17, %c1_i32, %c16_i32 : i32
    %19 = vector.broadcast %18 : i32 to vector<128x1xi32>
    %20 = arith.remsi %16, %19 : vector<128x1xi32>
    %c0_i32_8 = arith.constant 0 : i32
    %21 = vector.broadcast %c0_i32_8 : i32 to vector<128x1xi32>
    %22 = arith.cmpi ne, %20, %21 : vector<128x1xi32>
    %c0_i32_9 = arith.constant 0 : i32
    %23 = vector.broadcast %c0_i32_9 : i32 to vector<128x1xi32>
    %24 = arith.cmpi slt, %20, %23 : vector<128x1xi32>
    %c0_i32_10 = arith.constant 0 : i32
    %25 = arith.cmpi slt, %18, %c0_i32_10 : i32
    %26 = vector.broadcast %25 : i1 to vector<128x1xi1>
    %27 = vector.broadcast %26 : vector<128x1xi1> to vector<128x1xi1>
    %28 = arith.xori %24, %27 : vector<128x1xi1>
    %29 = arith.andi %28, %22 : vector<128x1xi1>
    %30 = vector.broadcast %18 : i32 to vector<128x1xi32>
    %31 = arith.addi %20, %30 : vector<128x1xi32>
    %32 = arith.select %29, %31, %20 : vector<128x1xi1>, vector<128x1xi32>
    %c0_i32_11 = arith.constant 0 : i32
    %33 = vector.broadcast %c0_i32_11 : i32 to vector<128x1xi32>
    %34 = arith.cmpi eq, %32, %33 : vector<128x1xi32>
    %c1_i32_12 = arith.constant 1 : i32
    %35 = tpu.dynamic_rotate %13 by %c1_i32_12 dim 0 : vector<128x128xf32>, i32 -> vector<128x128xf32>
    %cst_13 = arith.constant 0.000000e+00 : f32
    %36 = vector.shape_cast %34 : vector<128x1xi1> to vector<128x1xi1>
    %37 = vector.broadcast %36 : vector<128x1xi1> to vector<128x128xi1>
    %38 = vector.broadcast %cst_13 : f32 to vector<128x128xf32>
    %39 = arith.select %37, %38, %35 : vector<128x128xi1>, vector<128x128xf32>
    %c15_i32 = arith.constant 15 : i32
    %40 = vector.broadcast %c15_i32 : i32 to vector<128x1xi32>
    %41 = arith.cmpi eq, %32, %40 : vector<128x1xi32>
    %c127_i32 = arith.constant 127 : i32
    %42 = tpu.dynamic_rotate %15 by %c127_i32 dim 0 : vector<128x128xf32>, i32 -> vector<128x128xf32>
    %cst_14 = arith.constant 0.000000e+00 : f32
    %43 = vector.shape_cast %41 : vector<128x1xi1> to vector<128x1xi1>
    %44 = vector.broadcast %43 : vector<128x1xi1> to vector<128x128xi1>
    %45 = vector.broadcast %cst_14 : f32 to vector<128x128xf32>
    %46 = arith.select %44, %45, %42 : vector<128x128xi1>, vector<128x128xf32>
    %47 = arith.addf %39, %14 : vector<128x128xf32>
    %48 = arith.addf %47, %46 : vector<128x128xf32>
    %c0_15 = arith.constant 0 : index
    %c0_16 = arith.constant 0 : index
    %49 = vector.load %arg4[%c0_15, %c0_16] : memref<1x128xf32, #tpu.memory_space<vmem>>, vector<1x128xf32>
    %50 = vector.broadcast %49 : vector<1x128xf32> to vector<128x128xf32>
    %51 = arith.addf %48, %50 : vector<128x128xf32>
    %cst_17 = arith.constant 0.000000e+00 : f32
    %52 = vector.broadcast %cst_17 : f32 to vector<128x128xf32>
    %53 = arith.maximumf %51, %52 : vector<128x128xf32>
    %c127_i32_18 = arith.constant 127 : i32
    %54 = tpu.dynamic_rotate %53 by %c127_i32_18 dim 0 : vector<128x128xf32>, i32 -> vector<128x128xf32>
    %55 = arith.maximumf %53, %54 : vector<128x128xf32>
    %c0_19 = arith.constant 0 : index
    %c0_20 = arith.constant 0 : index
    %56 = vector.load %arg12[%c0_19, %c0_20] : memref<128x128xf32, #tpu.memory_space<vmem>>, vector<128x128xf32>
    tpu.vector_store %arg12[%c0_19, %c0_20], %55 {strides = array<i32>} : memref<128x128xf32, #tpu.memory_space<vmem>>, vector<128x128xf32>,
    %c0_21 = arith.constant 0 : index
    %c0_22 = arith.constant 0 : index
    %57 = tpu.strided_load %arg12[%c0_21, %c0_22] {strides = array<i32: 2, 1>} : memref<128x128xf32, #tpu.memory_space<vmem>>, vector<64x128xf32>
    %58 = arith.truncf %57 : vector<64x128xf32> to vector<64x128xbf16>
    %c0_23 = arith.constant 0 : index
    %c0_24 = arith.constant 0 : index
    %59 = vector.load %arg5[%c0_23, %c0_24] : memref<128x384xbf16, #tpu.memory_space<vmem>>, vector<128x384xbf16>
    %cst_25 = arith.constant dense<0.000000e+00> : vector<64x384xf32>
    %60 = tpu.matmul %58, %59, %cst_25 {dimension_numbers = #tpu.dot_dimension_numbers<[1], [0], [0], [1], [0, 0, 1, 1], [], []>} : vector<64x128xbf16>, vector<128x384xbf16>, vector<64x384xf32> -> vector<64x384xf32>
    %61 = vector.extract_strided_slice %60 {offsets = [0, 0], sizes = [64, 128], strides = [1, 1]} : vector<64x384xf32> to vector<64x128xf32>
    %62 = vector.extract_strided_slice %60 {offsets = [0, 128], sizes = [64, 128], strides = [1, 1]} : vector<64x384xf32> to vector<64x128xf32>
    %63 = vector.extract_strided_slice %60 {offsets = [0, 256], sizes = [64, 128], strides = [1, 1]} : vector<64x384xf32> to vector<64x128xf32>
    %64 = tpu.iota {dimensions = array<i32: 0>} : vector<64x1xi32>
    %c8_i32 = arith.constant 8 : i32
    %c0_i32_26 = arith.constant 0 : i32
    %65 = arith.cmpi eq, %c8_i32, %c0_i32_26 : i32
    %c1_i32_27 = arith.constant 1 : i32
    %66 = arith.select %65, %c1_i32_27, %c8_i32 : i32
    %67 = vector.broadcast %66 : i32 to vector<64x1xi32>
    %68 = arith.remsi %64, %67 : vector<64x1xi32>
    %c0_i32_28 = arith.constant 0 : i32
    %69 = vector.broadcast %c0_i32_28 : i32 to vector<64x1xi32>
    %70 = arith.cmpi ne, %68, %69 : vector<64x1xi32>
    %c0_i32_29 = arith.constant 0 : i32
    %71 = vector.broadcast %c0_i32_29 : i32 to vector<64x1xi32>
    %72 = arith.cmpi slt, %68, %71 : vector<64x1xi32>
    %c0_i32_30 = arith.constant 0 : i32
    %73 = arith.cmpi slt, %66, %c0_i32_30 : i32
    %74 = vector.broadcast %73 : i1 to vector<64x1xi1>
    %75 = vector.broadcast %74 : vector<64x1xi1> to vector<64x1xi1>
    %76 = arith.xori %72, %75 : vector<64x1xi1>
    %77 = arith.andi %76, %70 : vector<64x1xi1>
    %78 = vector.broadcast %66 : i32 to vector<64x1xi32>
    %79 = arith.addi %68, %78 : vector<64x1xi32>
    %80 = arith.select %77, %79, %68 : vector<64x1xi1>, vector<64x1xi32>
    %c0_i32_31 = arith.constant 0 : i32
    %81 = vector.broadcast %c0_i32_31 : i32 to vector<64x1xi32>
    %82 = arith.cmpi eq, %80, %81 : vector<64x1xi32>
    %c1_i32_32 = arith.constant 1 : i32
    %83 = tpu.dynamic_rotate %61 by %c1_i32_32 dim 0 : vector<64x128xf32>, i32 -> vector<64x128xf32>
    %cst_33 = arith.constant 0.000000e+00 : f32
    %84 = vector.shape_cast %82 : vector<64x1xi1> to vector<64x1xi1>
    %85 = vector.broadcast %84 : vector<64x1xi1> to vector<64x128xi1>
    %86 = vector.broadcast %cst_33 : f32 to vector<64x128xf32>
    %87 = arith.select %85, %86, %83 : vector<64x128xi1>, vector<64x128xf32>
    %c7_i32 = arith.constant 7 : i32
    %88 = vector.broadcast %c7_i32 : i32 to vector<64x1xi32>
    %89 = arith.cmpi eq, %80, %88 : vector<64x1xi32>
    %c63_i32 = arith.constant 63 : i32
    %90 = tpu.dynamic_rotate %63 by %c63_i32 dim 0 : vector<64x128xf32>, i32 -> vector<64x128xf32>
    %cst_34 = arith.constant 0.000000e+00 : f32
    %91 = vector.shape_cast %89 : vector<64x1xi1> to vector<64x1xi1>
    %92 = vector.broadcast %91 : vector<64x1xi1> to vector<64x128xi1>
    %93 = vector.broadcast %cst_34 : f32 to vector<64x128xf32>
    %94 = arith.select %92, %93, %90 : vector<64x128xi1>, vector<64x128xf32>
    %95 = arith.addf %87, %62 : vector<64x128xf32>
    %96 = arith.addf %95, %94 : vector<64x128xf32>
    %c0_35 = arith.constant 0 : index
    %c0_36 = arith.constant 0 : index
    %97 = vector.load %arg6[%c0_35, %c0_36] : memref<1x128xf32, #tpu.memory_space<vmem>>, vector<1x128xf32>
    %98 = vector.broadcast %97 : vector<1x128xf32> to vector<64x128xf32>
    %99 = arith.addf %96, %98 : vector<64x128xf32>
    %cst_37 = arith.constant 0.000000e+00 : f32
    %100 = vector.broadcast %cst_37 : f32 to vector<64x128xf32>
    %101 = arith.maximumf %99, %100 : vector<64x128xf32>
    %c63_i32_38 = arith.constant 63 : i32
    %102 = tpu.dynamic_rotate %101 by %c63_i32_38 dim 0 : vector<64x128xf32>, i32 -> vector<64x128xf32>
    %103 = arith.maximumf %101, %102 : vector<64x128xf32>
    %c0_39 = arith.constant 0 : index
    %c0_40 = arith.constant 0 : index
    %104 = vector.load %arg13[%c0_39, %c0_40] : memref<64x128xf32, #tpu.memory_space<vmem>>, vector<64x128xf32>
    tpu.vector_store %arg13[%c0_39, %c0_40], %103 {strides = array<i32>} : memref<64x128xf32, #tpu.memory_space<vmem>>, vector<64x128xf32>,
    %c0_41 = arith.constant 0 : index
    %c0_42 = arith.constant 0 : index
    %105 = tpu.strided_load %arg13[%c0_41, %c0_42] {strides = array<i32: 2, 1>} : memref<64x128xf32, #tpu.memory_space<vmem>>, vector<32x128xf32>
    %106 = arith.truncf %105 : vector<32x128xf32> to vector<32x128xbf16>
    %c0_43 = arith.constant 0 : index
    %c0_44 = arith.constant 0 : index
    %107 = vector.load %arg7[%c0_43, %c0_44] : memref<128x384xbf16, #tpu.memory_space<vmem>>, vector<128x384xbf16>
    %cst_45 = arith.constant dense<0.000000e+00> : vector<32x384xf32>
    %108 = tpu.matmul %106, %107, %cst_45 {dimension_numbers = #tpu.dot_dimension_numbers<[1], [0], [0], [1], [0, 0, 1, 1], [], []>} : vector<32x128xbf16>, vector<128x384xbf16>, vector<32x384xf32> -> vector<32x384xf32>
    %109 = vector.extract_strided_slice %108 {offsets = [0, 0], sizes = [32, 128], strides = [1, 1]} : vector<32x384xf32> to vector<32x128xf32>
    %110 = vector.extract_strided_slice %108 {offsets = [0, 128], sizes = [32, 128], strides = [1, 1]} : vector<32x384xf32> to vector<32x128xf32>
    %111 = vector.extract_strided_slice %108 {offsets = [0, 256], sizes = [32, 128], strides = [1, 1]} : vector<32x384xf32> to vector<32x128xf32>
    %112 = tpu.iota {dimensions = array<i32: 0>} : vector<32x1xi32>
    %c4_i32 = arith.constant 4 : i32
    %c0_i32_46 = arith.constant 0 : i32
    %113 = arith.cmpi eq, %c4_i32, %c0_i32_46 : i32
    %c1_i32_47 = arith.constant 1 : i32
    %114 = arith.select %113, %c1_i32_47, %c4_i32 : i32
    %115 = vector.broadcast %114 : i32 to vector<32x1xi32>
    %116 = arith.remsi %112, %115 : vector<32x1xi32>
    %c0_i32_48 = arith.constant 0 : i32
    %117 = vector.broadcast %c0_i32_48 : i32 to vector<32x1xi32>
    %118 = arith.cmpi ne, %116, %117 : vector<32x1xi32>
    %c0_i32_49 = arith.constant 0 : i32
    %119 = vector.broadcast %c0_i32_49 : i32 to vector<32x1xi32>
    %120 = arith.cmpi slt, %116, %119 : vector<32x1xi32>
    %c0_i32_50 = arith.constant 0 : i32
    %121 = arith.cmpi slt, %114, %c0_i32_50 : i32
    %122 = vector.broadcast %121 : i1 to vector<32x1xi1>
    %123 = vector.broadcast %122 : vector<32x1xi1> to vector<32x1xi1>
    %124 = arith.xori %120, %123 : vector<32x1xi1>
    %125 = arith.andi %124, %118 : vector<32x1xi1>
    %126 = vector.broadcast %114 : i32 to vector<32x1xi32>
    %127 = arith.addi %116, %126 : vector<32x1xi32>
    %128 = arith.select %125, %127, %116 : vector<32x1xi1>, vector<32x1xi32>
    %c0_i32_51 = arith.constant 0 : i32
    %129 = vector.broadcast %c0_i32_51 : i32 to vector<32x1xi32>
    %130 = arith.cmpi eq, %128, %129 : vector<32x1xi32>
    %c1_i32_52 = arith.constant 1 : i32
    %131 = tpu.dynamic_rotate %109 by %c1_i32_52 dim 0 : vector<32x128xf32>, i32 -> vector<32x128xf32>
    %cst_53 = arith.constant 0.000000e+00 : f32
    %132 = vector.shape_cast %130 : vector<32x1xi1> to vector<32x1xi1>
    %133 = vector.broadcast %132 : vector<32x1xi1> to vector<32x128xi1>
    %134 = vector.broadcast %cst_53 : f32 to vector<32x128xf32>
    %135 = arith.select %133, %134, %131 : vector<32x128xi1>, vector<32x128xf32>
    %c3_i32 = arith.constant 3 : i32
    %136 = vector.broadcast %c3_i32 : i32 to vector<32x1xi32>
    %137 = arith.cmpi eq, %128, %136 : vector<32x1xi32>
    %c31_i32 = arith.constant 31 : i32
    %138 = tpu.dynamic_rotate %111 by %c31_i32 dim 0 : vector<32x128xf32>, i32 -> vector<32x128xf32>
    %cst_54 = arith.constant 0.000000e+00 : f32
    %139 = vector.shape_cast %137 : vector<32x1xi1> to vector<32x1xi1>
    %140 = vector.broadcast %139 : vector<32x1xi1> to vector<32x128xi1>
    %141 = vector.broadcast %cst_54 : f32 to vector<32x128xf32>
    %142 = arith.select %140, %141, %138 : vector<32x128xi1>, vector<32x128xf32>
    %143 = arith.addf %135, %110 : vector<32x128xf32>
    %144 = arith.addf %143, %142 : vector<32x128xf32>
    %c0_55 = arith.constant 0 : index
    %c0_56 = arith.constant 0 : index
    %145 = vector.load %arg8[%c0_55, %c0_56] : memref<1x128xf32, #tpu.memory_space<vmem>>, vector<1x128xf32>
    %146 = vector.broadcast %145 : vector<1x128xf32> to vector<32x128xf32>
    %147 = arith.addf %144, %146 : vector<32x128xf32>
    %cst_57 = arith.constant 0.000000e+00 : f32
    %148 = vector.broadcast %cst_57 : f32 to vector<32x128xf32>
    %149 = arith.maximumf %147, %148 : vector<32x128xf32>
    %c31_i32_58 = arith.constant 31 : i32
    %150 = tpu.dynamic_rotate %149 by %c31_i32_58 dim 0 : vector<32x128xf32>, i32 -> vector<32x128xf32>
    %151 = arith.maximumf %149, %150 : vector<32x128xf32>
    %c0_59 = arith.constant 0 : index
    %c0_60 = arith.constant 0 : index
    %152 = vector.load %arg14[%c0_59, %c0_60] : memref<32x128xf32, #tpu.memory_space<vmem>>, vector<32x128xf32>
    tpu.vector_store %arg14[%c0_59, %c0_60], %151 {strides = array<i32>} : memref<32x128xf32, #tpu.memory_space<vmem>>, vector<32x128xf32>,
    %c0_61 = arith.constant 0 : index
    %c0_62 = arith.constant 0 : index
    %153 = tpu.strided_load %arg14[%c0_61, %c0_62] {strides = array<i32: 2, 1>} : memref<32x128xf32, #tpu.memory_space<vmem>>, vector<16x128xf32>
    %c15_i32_63 = arith.constant 15 : i32
    %154 = tpu.dynamic_rotate %153 by %c15_i32_63 dim 0 : vector<16x128xf32>, i32 -> vector<16x128xf32>
    %155 = arith.maximumf %153, %154 : vector<16x128xf32>
    %c0_64 = arith.constant 0 : index
    %c0_65 = arith.constant 0 : index
    %156 = vector.load %arg14[%c0_64, %c0_65] : memref<32x128xf32, #tpu.memory_space<vmem>>, vector<16x128xf32>
    tpu.vector_store %arg14[%c0_64, %c0_65], %155 {strides = array<i32>} : memref<32x128xf32, #tpu.memory_space<vmem>>, vector<16x128xf32>,
    %c0_66 = arith.constant 0 : index
    %c0_67 = arith.constant 0 : index
    %157 = tpu.strided_load %arg14[%c0_66, %c0_67] {strides = array<i32: 2, 1>} : memref<32x128xf32, #tpu.memory_space<vmem>>, vector<8x128xf32>
    %158 = arith.truncf %157 : vector<8x128xf32> to vector<8x128xbf16>
    %c0_68 = arith.constant 0 : index
    %c0_69 = arith.constant 0 : index
    %159 = vector.load %arg9[%c0_68, %c0_69] : memref<128x128xbf16, #tpu.memory_space<vmem>>, vector<128x128xbf16>
    %cst_70 = arith.constant dense<0.000000e+00> : vector<8x128xf32>
    %160 = tpu.matmul %158, %159, %cst_70 {dimension_numbers = #tpu.dot_dimension_numbers<[1], [0], [0], [1], [0, 0, 1, 1], [], []>} : vector<8x128xbf16>, vector<128x128xbf16>, vector<8x128xf32> -> vector<8x128xf32>
    %c0_71 = arith.constant 0 : index
    %c0_72 = arith.constant 0 : index
    %161 = vector.load %arg10[%c0_71, %c0_72] : memref<1x128xf32, #tpu.memory_space<vmem>>, vector<1x128xf32>
    %162 = vector.broadcast %161 : vector<1x128xf32> to vector<8x128xf32>
    %163 = arith.addf %160, %162 : vector<8x128xf32>
    %c0_73 = arith.constant 0 : index
    %c0_74 = arith.constant 0 : index
    %164 = vector.load %arg11[%c0_73, %c0_74] : memref<8x128xf32, #tpu.memory_space<vmem>>, vector<8x128xf32>
    tpu.vector_store %arg11[%c0_73, %c0_74], %163 {strides = array<i32>} : memref<8x128xf32, #tpu.memory_space<vmem>>, vector<8x128xf32>,
    return
  }
  func.func @transform_0(%arg0: i32) -> (i32, i32) {
    %c0_i32 = arith.constant 0 : i32
    %c0_i32_0 = arith.constant 0 : i32
    return %arg0, %c0_i32 : i32, i32
  }
  func.func @transform_1(%arg0: i32) -> (i32, i32) {
    %c0_i32 = arith.constant 0 : i32
    %c0_i32_0 = arith.constant 0 : i32
    %c0_i32_1 = arith.constant 0 : i32
    return %c0_i32, %c0_i32_0 : i32, i32
  }
  func.func @transform_2(%arg0: i32) -> (i32, i32) {
    %c0_i32 = arith.constant 0 : i32
    %c0_i32_0 = arith.constant 0 : i32
    %c0_i32_1 = arith.constant 0 : i32
    return %c0_i32, %c0_i32_0 : i32, i32
  }
  func.func @transform_3(%arg0: i32) -> (i32, i32) {
    %c0_i32 = arith.constant 0 : i32
    %c0_i32_0 = arith.constant 0 : i32
    %c0_i32_1 = arith.constant 0 : i32
    return %c0_i32, %c0_i32_0 : i32, i32
  }
  func.func @transform_4(%arg0: i32) -> (i32, i32) {
    %c0_i32 = arith.constant 0 : i32
    %c0_i32_0 = arith.constant 0 : i32
    %c0_i32_1 = arith.constant 0 : i32
    return %c0_i32, %c0_i32_0 : i32, i32
  }
  func.func @transform_5(%arg0: i32) -> (i32, i32) {
    %c0_i32 = arith.constant 0 : i32
    %c0_i32_0 = arith.constant 0 : i32
    %c0_i32_1 = arith.constant 0 : i32
    return %c0_i32, %c0_i32_0 : i32, i32
  }
  func.func @transform_6(%arg0: i32) -> (i32, i32) {
    %c0_i32 = arith.constant 0 : i32
    %c0_i32_0 = arith.constant 0 : i32
    %c0_i32_1 = arith.constant 0 : i32
    return %c0_i32, %c0_i32_0 : i32, i32
  }
  func.func @transform_7(%arg0: i32) -> (i32, i32) {
    %c0_i32 = arith.constant 0 : i32
    %c0_i32_0 = arith.constant 0 : i32
    %c0_i32_1 = arith.constant 0 : i32
    return %c0_i32, %c0_i32_0 : i32, i32
  }
  func.func @transform_8(%arg0: i32) -> (i32, i32) {
    %c0_i32 = arith.constant 0 : i32
    %c0_i32_0 = arith.constant 0 : i32
    %c0_i32_1 = arith.constant 0 : i32
    return %c0_i32, %c0_i32_0 : i32, i32
  }
  func.func @transform_9(%arg0: i32) -> (i32, i32) {
    %c0_i32 = arith.constant 0 : i32
    %c0_i32_0 = arith.constant 0 : i32
    %c0_i32_1 = arith.constant 0 : i32
    return %c0_i32, %c0_i32_0 : i32, i32
  }
  func.func @transform_10(%arg0: i32) -> (i32, i32) {
    %c0_i32 = arith.constant 0 : i32
    %c0_i32_0 = arith.constant 0 : i32
    return %arg0, %c0_i32 : i32, i32
  }
}

</mosaic_0001>

<llo_original>
// kernel: tpu_custom_call.1
$region0: #{tpu_custom_call.1}
  #allocation0 [shape = 'u32[]', space=smem, size = 0x4, offset = 0x4, fixed_abs, tag = 'smem constant byte address 0x4 - core index']
  #allocation1 [shape = 'u32[144,128]{1,0:T(1,128)}', space=vmem, size = 0x12000, scoped, tag = 'internal scratch']
  #allocation2 [shape = 'f32[128,128]{1,0:T(8,128)}', space=vmem, size = 0x10000, scoped, tag = 'scratch operand']
  #allocation3 [shape = 'f32[64,128]{1,0:T(8,128)}', space=vmem, size = 0x8000, scoped, tag = 'scratch operand']
  #allocation4 [shape = 'f32[32,128]{1,0:T(8,128)}', space=vmem, size = 0x4000, scoped, tag = 'scratch operand']
  %s0 = inlined_call_operand.vmem [shape: s32[256,1], index: 0, kind: input, shape index: {}]
  %s1 = inlined_call_operand.vmem [shape: bf16[128,128], index: 1, kind: input, shape index: {}]
  %s2 = inlined_call_operand.vmem [shape: bf16[128,384], index: 2, kind: input, shape index: {}]
  %s3 = inlined_call_operand.vmem [shape: f32[1,128], index: 3, kind: input, shape index: {}]
  %s4 = inlined_call_operand.hbm [shape: bf16[128,384], index: 4, kind: input, shape index: {}]
  %s5 = inlined_call_operand.vmem [shape: f32[1,128], index: 5, kind: input, shape index: {}]
  %s6 = inlined_call_operand.hbm [shape: bf16[128,384], index: 6, kind: input, shape index: {}]
  %s7 = inlined_call_operand.vmem [shape: f32[1,128], index: 7, kind: input, shape index: {}]
  %s8 = inlined_call_operand.hbm [shape: bf16[128,128], index: 8, kind: input, shape index: {}]
  %s9 = inlined_call_operand.vmem [shape: f32[1,128], index: 9, kind: input, shape index: {}]
  %s10 = inlined_call_operand.hbm [shape: f32[16,128], index: 10, kind: output, shape index: {}]
  %s11 = sld [smem:[#allocation0]]
  $region85: #{tpu_custom_call.1} parent=0
    _
  %s13 = ssub.s32 1, %s11
  %s14 = scalar_select 0, %s13, %s11
  $region1: #{tpu_custom_call.1} parent=0
    #allocation5 [shape = 'u8[98304]{0}', space=vmem, size = 0x18000, scoped, tag = 'input window, operand 4, single buffered']
    #allocation6 [shape = 's32[2]{0}', space=sflag, size = 0x8, scoped, tag = 'scoped memory for tpu_custom_call.1']
    #allocation7 [shape = 's32[2]{0}', space=sflag, size = 0x8, scoped, tag = 'scoped memory for tpu_custom_call.1']
    #allocation8 [shape = 'u8[98304]{0}', space=vmem, size = 0x18000, scoped, tag = 'input window, operand 6, single buffered']
    #allocation9 [shape = 's32[1]{0}', space=sflag, size = 0x4, scoped, tag = 'scoped memory for tpu_custom_call.1']
    #allocation10 [shape = 'u8[32768]{0}', space=vmem, size = 0x8000, scoped, tag = 'input window, operand 8, single buffered']
    #allocation11 [shape = 'u8[8192]{0}', space=vmem, size = 0x2000, scoped, tag = 'output window, operand 0']
    %15 = vsyncpa [#allocation6], 0
    %16 = vsyncpa [#allocation9], 0
    %17 = vsyncpa [#allocation7], 0
    %s18 = scalar_lea.sflag [#allocation7], 1
    %19 = vsyncpa %s18, 0
    loop: start=0, step=1, limit=4
    $region2: #{tpu_custom_call.1} parent=1 // loop_pre_header
      _
    $region3: #{tpu_custom_call.1} parent=1 // loop_header
      %s21 = sphi 0, %s25
      %p22 = scmp.ge.s32.totalorder %s21, 4
      %s31 = sphi 0, %s33
      %s34 = sphi 0, %s31
      %s35 = sphi 0, %s34
      %s51 = sphi 0, %s35
      %s55 = sphi 0, %s55
      %s57 = sphi 0, %s55
      %s58 = sphi 0, %s57
      %s72 = sphi 0, %s58
      %s76 = sphi 0, %s76
      %s78 = sphi 0, %s76
      %s79 = sphi 0, %s78
      %s93 = sphi 0, %s79
      %s97 = sphi 0, %s97
      %s99 = sphi 0, %s97
      %s100 = sphi 0, %s99
      %s114 = sphi 0, %s100
      %s118 = sphi 0, %s118
      %s120 = sphi 0, %s118
      %s121 = sphi 0, %s120
      %s135 = sphi 0, %s121
      %s139 = sphi 0, %s139
      %s141 = sphi 0, %s139
      %s142 = sphi 0, %s141
      %s156 = sphi 0, %s142
      %s160 = sphi 0, %s160
      %s162 = sphi 0, %s160
      %s163 = sphi 0, %s162
      %s177 = sphi 0, %s163
      %s181 = sphi 0, %s181
      %s183 = sphi 0, %s181
      %s184 = sphi 0, %s183
      %s198 = sphi 0, %s184
      %s202 = sphi 0, %s202
      %s204 = sphi 0, %s202
      %s205 = sphi 0, %s204
      %s219 = sphi 0, %s205
      %s223 = sphi 0, %s223
      %s225 = sphi 0, %s223
      %s226 = sphi 0, %s225
      %s240 = sphi 0, %s226
      %s246 = sphi 0, %s248
      %s249 = sphi 0, %s246
      %s250 = sphi 0, %s249
      %s266 = sphi 0, %s250
    $region4: #{tpu_custom_call.1} parent=1 // loop_header_branch
      %24 = sbr.rel (%p22) target = $region8
    $region5: #{tpu_custom_call.1} parent=1 // loop_body
      %s26 = ssub.s32 %s21, 1
      %s27 = ssub.s32 %s21, 2
      %s28 = sadd.s32 %s21, 1
      %s29 = ssub.s32 %s21, %s28
      %p30 = scmp.eq.s32.totalorder %s29, 0
      %s32 = sadd.s32 %s31, 1
      %s33 = scalar_select %p30, %s31, %s32
      %p36 = pneg %p30
      %p37 = scmp.eq.s32.totalorder %s21, 1
      %p38 = por %p36, %p37
      %p39 = scmp.ne.s32.totalorder %s31, %s34
      %p40 = scmp.eq.s32.totalorder %s21, 0
      %p41 = por %p39, %p40
      %p42 = scmp.ne.s32.totalorder %s31, %s34
      %p43 = scmp.eq.s32.totalorder %s26, 1
      %p44 = por %p42, %p43
      %p45 = scmp.ne.s32.totalorder %s34, %s35
      %p46 = scmp.eq.s32.totalorder %s26, 0
      %p47 = por %p45, %p46
      %p48 = scmp.ne.s32.totalorder %s34, %s35
      %p49 = scmp.eq.s32.totalorder %s27, 1
      %p50 = por %p48, %p49
      %p52 = scmp.ne.s32.totalorder %s35, %s51
      %p53 = scmp.eq.s32.totalorder %s27, 0
      %p54 = por %p52, %p53
      %s56 = sadd.s32 %s55, 1
      %p59 = scmp.eq.s32.totalorder %s21, 1
      %p60 = scmp.ne.s32.totalorder %s55, %s57
      %p61 = scmp.eq.s32.totalorder %s21, 0
      %p62 = por %p60, %p61
      %p63 = scmp.ne.s32.totalorder %s55, %s57
      %p64 = scmp.eq.s32.totalorder %s26, 1
      %p65 = por %p63, %p64
      %p66 = scmp.ne.s32.totalorder %s57, %s58
      %p67 = scmp.eq.s32.totalorder %s26, 0
      %p68 = por %p66, %p67
      %p69 = scmp.ne.s32.totalorder %s57, %s58
      %p70 = scmp.eq.s32.totalorder %s27, 1
      %p71 = por %p69, %p70
      %p73 = scmp.ne.s32.totalorder %s58, %s72
      %p74 = scmp.eq.s32.totalorder %s27, 0
      %p75 = por %p73, %p74
      %s77 = sadd.s32 %s76, 1
      %p80 = scmp.eq.s32.totalorder %s21, 1
      %p81 = scmp.ne.s32.totalorder %s76, %s78
      %p82 = scmp.eq.s32.totalorder %s21, 0
      %p83 = por %p81, %p82
      %p84 = scmp.ne.s32.totalorder %s76, %s78
      %p85 = scmp.eq.s32.totalorder %s26, 1
      %p86 = por %p84, %p85
      %p87 = scmp.ne.s32.totalorder %s78, %s79
      %p88 = scmp.eq.s32.totalorder %s26, 0
      %p89 = por %p87, %p88
      %p90 = scmp.ne.s32.totalorder %s78, %s79
      %p91 = scmp.eq.s32.totalorder %s27, 1
      %p92 = por %p90, %p91
      %p94 = scmp.ne.s32.totalorder %s79, %s93
      %p95 = scmp.eq.s32.totalorder %s27, 0
      %p96 = por %p94, %p95
      %s98 = sadd.s32 %s97, 1
      %p101 = scmp.eq.s32.totalorder %s21, 1
      %p102 = scmp.ne.s32.totalorder %s97, %s99
      %p103 = scmp.eq.s32.totalorder %s21, 0
      %p104 = por %p102, %p103
      %p105 = scmp.ne.s32.totalorder %s97, %s99
      %p106 = scmp.eq.s32.totalorder %s26, 1
      %p107 = por %p105, %p106
      %p108 = scmp.ne.s32.totalorder %s99, %s100
      %p109 = scmp.eq.s32.totalorder %s26, 0
      %p110 = por %p108, %p109
      %p111 = scmp.ne.s32.totalorder %s99, %s100
      %p112 = scmp.eq.s32.totalorder %s27, 1
      %p113 = por %p111, %p112
      %p115 = scmp.ne.s32.totalorder %s100, %s114
      %p116 = scmp.eq.s32.totalorder %s27, 0
      %p117 = por %p115, %p116
      %s119 = sadd.s32 %s118, 1
      %p122 = scmp.eq.s32.totalorder %s21, 1
      %p123 = scmp.ne.s32.totalorder %s118, %s120
      %p124 = scmp.eq.s32.totalorder %s21, 0
      %p125 = por %p123, %p124
      %p126 = scmp.ne.s32.totalorder %s118, %s120
      %p127 = scmp.eq.s32.totalorder %s26, 1
      %p128 = por %p126, %p127
      %p129 = scmp.ne.s32.totalorder %s120, %s121
      %p130 = scmp.eq.s32.totalorder %s26, 0
      %p131 = por %p129, %p130
      %p132 = scmp.ne.s32.totalorder %s120, %s121
      %p133 = scmp.eq.s32.totalorder %s27, 1
      %p134 = por %p132, %p133
      %p136 = scmp.ne.s32.totalorder %s121, %s135
      %p137 = scmp.eq.s32.totalorder %s27, 0
      %p138 = por %p136, %p137
      %s140 = sadd.s32 %s139, 1
      %p143 = scmp.eq.s32.totalorder %s21, 1
      %p144 = scmp.ne.s32.totalorder %s139, %s141
      %p145 = scmp.eq.s32.totalorder %s21, 0
      %p146 = por %p144, %p145
      %p147 = scmp.ne.s32.totalorder %s139, %s141
      %p148 = scmp.eq.s32.totalorder %s26, 1
      %p149 = por %p147, %p148
      %p150 = scmp.ne.s32.totalorder %s141, %s142
      %p151 = scmp.eq.s32.totalorder %s26, 0
      %p152 = por %p150, %p151
      %p153 = scmp.ne.s32.totalorder %s141, %s142
      %p154 = scmp.eq.s32.totalorder %s27, 1
      %p155 = por %p153, %p154
      %p157 = scmp.ne.s32.totalorder %s142, %s156
      %p158 = scmp.eq.s32.totalorder %s27, 0
      %p159 = por %p157, %p158
      %s161 = sadd.s32 %s160, 1
      %p164 = scmp.eq.s32.totalorder %s21, 1
      %p165 = scmp.ne.s32.totalorder %s160, %s162
      %p166 = scmp.eq.s32.totalorder %s21, 0
      %p167 = por %p165, %p166
      %p168 = scmp.ne.s32.totalorder %s160, %s162
      %p169 = scmp.eq.s32.totalorder %s26, 1
      %p170 = por %p168, %p169
      %p171 = scmp.ne.s32.totalorder %s162, %s163
      %p172 = scmp.eq.s32.totalorder %s26, 0
      %p173 = por %p171, %p172
      %p174 = scmp.ne.s32.totalorder %s162, %s163
      %p175 = scmp.eq.s32.totalorder %s27, 1
      %p176 = por %p174, %p175
      %p178 = scmp.ne.s32.totalorder %s163, %s177
      %p179 = scmp.eq.s32.totalorder %s27, 0
      %p180 = por %p178, %p179
      %s182 = sadd.s32 %s181, 1
      %p185 = scmp.eq.s32.totalorder %s21, 1
      %p186 = scmp.ne.s32.totalorder %s181, %s183
      %p187 = scmp.eq.s32.totalorder %s21, 0
      %p188 = por %p186, %p187
      %p189 = scmp.ne.s32.totalorder %s181, %s183
      %p190 = scmp.eq.s32.totalorder %s26, 1
      %p191 = por %p189, %p190
      %p192 = scmp.ne.s32.totalorder %s183, %s184
      %p193 = scmp.eq.s32.totalorder %s26, 0
      %p194 = por %p192, %p193
      %p195 = scmp.ne.s32.totalorder %s183, %s184
      %p196 = scmp.eq.s32.totalorder %s27, 1
      %p197 = por %p195, %p196
      %p199 = scmp.ne.s32.totalorder %s184, %s198
      %p200 = scmp.eq.s32.totalorder %s27, 0
      %p201 = por %p199, %p200
      %s203 = sadd.s32 %s202, 1
      %p206 = scmp.eq.s32.totalorder %s21, 1
      %p207 = scmp.ne.s32.totalorder %s202, %s204
      %p208 = scmp.eq.s32.totalorder %s21, 0
      %p209 = por %p207, %p208
      %p210 = scmp.ne.s32.totalorder %s202, %s204
      %p211 = scmp.eq.s32.totalorder %s26, 1
      %p212 = por %p210, %p211
      %p213 = scmp.ne.s32.totalorder %s204, %s205
      %p214 = scmp.eq.s32.totalorder %s26, 0
      %p215 = por %p213, %p214
      %p216 = scmp.ne.s32.totalorder %s204, %s205
      %p217 = scmp.eq.s32.totalorder %s27, 1
      %p218 = por %p216, %p217
      %p220 = scmp.ne.s32.totalorder %s205, %s219
      %p221 = scmp.eq.s32.totalorder %s27, 0
      %p222 = por %p220, %p221
      %s224 = sadd.s32 %s223, 1
      %p227 = scmp.eq.s32.totalorder %s21, 1
      %p228 = scmp.ne.s32.totalorder %s223, %s225
      %p229 = scmp.eq.s32.totalorder %s21, 0
      %p230 = por %p228, %p229
      %p231 = scmp.ne.s32.totalorder %s223, %s225
      %p232 = scmp.eq.s32.totalorder %s26, 1
      %p233 = por %p231, %p232
      %p234 = scmp.ne.s32.totalorder %s225, %s226
      %p235 = scmp.eq.s32.totalorder %s26, 0
      %p236 = por %p234, %p235
      %p237 = scmp.ne.s32.totalorder %s225, %s226
      %p238 = scmp.eq.s32.totalorder %s27, 1
      %p239 = por %p237, %p238
      %p241 = scmp.ne.s32.totalorder %s226, %s240
      %p242 = scmp.eq.s32.totalorder %s27, 0
      %p243 = por %p241, %p242
      %s244 = ssub.s32 %s21, %s28
      %p245 = scmp.eq.s32.totalorder %s244, 0
      %s247 = sadd.s32 %s246, 1
      %s248 = scalar_select %p245, %s246, %s247
      %p251 = pneg %p245
      %p252 = scmp.eq.s32.totalorder %s21, 1
      %p253 = por %p251, %p252
      %p254 = scmp.ne.s32.totalorder %s246, %s249
      %p255 = scmp.eq.s32.totalorder %s21, 0
      %p256 = por %p254, %p255
      %p257 = scmp.ne.s32.totalorder %s246, %s249
      %p258 = scmp.eq.s32.totalorder %s26, 1
      %p259 = por %p257, %p258
      %p260 = scmp.ne.s32.totalorder %s249, %s250
      %p261 = scmp.eq.s32.totalorder %s26, 0
      %p262 = por %p260, %p261
      %p263 = scmp.ne.s32.totalorder %s249, %s250
      %p264 = scmp.eq.s32.totalorder %s27, 1
      %p265 = por %p263, %p264
      %p267 = scmp.ne.s32.totalorder %s250, %s266
      %p268 = scmp.eq.s32.totalorder %s27, 0
      %p269 = por %p267, %p268
      %p270 = scmp.le.s32.totalorder 1, %s21
      %p271 = scmp.lt.s32.totalorder %s21, 3
      %p272 = pnand %p270, %p271
      %p273 = pneg %p272
      // Predicated region
      $region9: #{tpu_custom_call.1} parent=5 // pred_check
        _
      $region10: #{tpu_custom_call.1} parent=5 // pred_check_branch
        %275 = sbr.rel (%p272) target = $region12
      $region11: #{tpu_custom_call.1} parent=5 // pred_region
        %s276 = ssub.s32 %s21, 1
        // Predicated region
        $region13: #{tpu_custom_call.1} parent=11 // pred_check
          %p277 = pneg %p68
        $region14: #{tpu_custom_call.1} parent=11 // pred_check_branch
          %279 = sbr.rel (%p277) target = $region16
        $region15: #{tpu_custom_call.1} parent=11 // pred_region
          _
        $region16: #{tpu_custom_call.1} parent=11 // pred_fallthru
          _
        // Predicated region
        $region17: #{tpu_custom_call.1} parent=11 // pred_check
          %p280 = pneg %p89
        $region18: #{tpu_custom_call.1} parent=11 // pred_check_branch
          %282 = sbr.rel (%p280) target = $region20
        $region19: #{tpu_custom_call.1} parent=11 // pred_region
          _
        $region20: #{tpu_custom_call.1} parent=11 // pred_fallthru
          _
        // Predicated region
        $region21: #{tpu_custom_call.1} parent=11 // pred_check
          %p283 = pneg %p110
        $region22: #{tpu_custom_call.1} parent=11 // pred_check_branch
          %285 = sbr.rel (%p283) target = $region24
        $region23: #{tpu_custom_call.1} parent=11 // pred_region
          _
        $region24: #{tpu_custom_call.1} parent=11 // pred_fallthru
          _
        // Predicated region
        $region25: #{tpu_custom_call.1} parent=11 // pred_check
          %p286 = pneg %p131
        $region26: #{tpu_custom_call.1} parent=11 // pred_check_branch
          %288 = sbr.rel (%p286) target = $region28
        $region27: #{tpu_custom_call.1} parent=11 // pred_region
          %s290 = ssub.s32 3072, 3072
          %291 = vsyncadd [#allocation6], %s290
          %s292 = sshll.u32 [#allocation5], 4
          %s293 = int_to_ptr.vmem [resolvable:$true] %s292
          %298 = dma.hbm_to_vmem [thread:$0]  %s4, 3072, %s293, [#allocation6], 192, 192, 12
        $region28: #{tpu_custom_call.1} parent=11 // pred_fallthru
          _
        // Predicated region
        $region29: #{tpu_custom_call.1} parent=11 // pred_check
          %p299 = pneg %p152
        $region30: #{tpu_custom_call.1} parent=11 // pred_check_branch
          %301 = sbr.rel (%p299) target = $region32
        $region31: #{tpu_custom_call.1} parent=11 // pred_region
          _
        $region32: #{tpu_custom_call.1} parent=11 // pred_fallthru
          _
        // Predicated region
        $region33: #{tpu_custom_call.1} parent=11 // pred_check
          %p302 = pneg %p173
        $region34: #{tpu_custom_call.1} parent=11 // pred_check_branch
          %304 = sbr.rel (%p302) target = $region36
        $region35: #{tpu_custom_call.1} parent=11 // pred_region
          %s306 = ssub.s32 3072, 3072
          %307 = vsyncadd [#allocation9], %s306
          %s308 = sshll.u32 [#allocation8], 4
          %s309 = int_to_ptr.vmem [resolvable:$true] %s308
          %314 = dma.hbm_to_vmem [thread:$0]  %s6, 3072, %s309, [#allocation9], 192, 192, 12
        $region36: #{tpu_custom_call.1} parent=11 // pred_fallthru
          _
        // Predicated region
        $region37: #{tpu_custom_call.1} parent=11 // pred_check
          %p315 = pneg %p194
        $region38: #{tpu_custom_call.1} parent=11 // pred_check_branch
          %317 = sbr.rel (%p315) target = $region40
        $region39: #{tpu_custom_call.1} parent=11 // pred_region
          _
        $region40: #{tpu_custom_call.1} parent=11 // pred_fallthru
          _
        // Predicated region
        $region41: #{tpu_custom_call.1} parent=11 // pred_check
          %p318 = pneg %p215
        $region42: #{tpu_custom_call.1} parent=11 // pred_check_branch
          %320 = sbr.rel (%p318) target = $region44
        $region43: #{tpu_custom_call.1} parent=11 // pred_region
          %s322 = ssub.s32 1024, 1024
          %323 = vsyncadd [#allocation9], %s322
          %s324 = sshll.u32 [#allocation10], 4
          %s325 = int_to_ptr.vmem [resolvable:$true] %s324
          %330 = dma.hbm_to_vmem [thread:$0]  %s8, 1024, %s325, [#allocation9], 64, 64, 4
        $region44: #{tpu_custom_call.1} parent=11 // pred_fallthru
          _
        // Predicated region
        $region45: #{tpu_custom_call.1} parent=11 // pred_check
          %p331 = pneg %p236
        $region46: #{tpu_custom_call.1} parent=11 // pred_check_branch
          %333 = sbr.rel (%p331) target = $region48
        $region47: #{tpu_custom_call.1} parent=11 // pred_region
          _
        $region48: #{tpu_custom_call.1} parent=11 // pred_fallthru
          _
      $region12: #{tpu_custom_call.1} parent=5 // pred_fallthru
        _
      %p334 = scmp.lt.s32.totalorder %s21, 2
      // Predicated region
      $region49: #{tpu_custom_call.1} parent=5 // pred_check
        %p335 = pneg %p334
      $region50: #{tpu_custom_call.1} parent=5 // pred_check_branch
        %337 = sbr.rel (%p335) target = $region52
      $region51: #{tpu_custom_call.1} parent=5 // pred_region
        // Predicated region
        $region53: #{tpu_custom_call.1} parent=51 // pred_check
          %p338 = pneg %p41
        $region54: #{tpu_custom_call.1} parent=51 // pred_check_branch
          %340 = sbr.rel (%p338) target = $region56
        $region55: #{tpu_custom_call.1} parent=51 // pred_region
          %s341 = smul.u32 16, %s21
          %p342 = scmp.lt.s32.totalorder %s341, 31
          %s343 = scalar_select %p342, %s341, 31
          %s344 = smul.addr %s343, 8
          %s345 = scalar_lea.vmem %s0, %s344
          %s346 = smul.u32 16, %s21
        $region56: #{tpu_custom_call.1} parent=51 // pred_fallthru
          _
      $region52: #{tpu_custom_call.1} parent=5 // pred_fallthru
        _
      %p347 = scmp.le.s32.totalorder 1, %s21
      %p348 = scmp.lt.s32.totalorder %s21, 3
      %p349 = pnand %p347, %p348
      %p350 = pneg %p349
      // Predicated region
      $region57: #{tpu_custom_call.1} parent=5 // pred_check
        _
      $region58: #{tpu_custom_call.1} parent=5 // pred_check_branch
        %352 = sbr.rel (%p349) target = $region60
      $region59: #{tpu_custom_call.1} parent=5 // pred_region
        %s353 = ssub.s32 %s21, 1
        // Predicated region
        $region61: #{tpu_custom_call.1} parent=59 // pred_check
          %p354 = pneg %p131
        $region62: #{tpu_custom_call.1} parent=59 // pred_check_branch
          %356 = sbr.rel (%p354) target = $region64
        $region63: #{tpu_custom_call.1} parent=59 // pred_region
          %357 = dma.done [#allocation6], 3072
        $region64: #{tpu_custom_call.1} parent=59 // pred_fallthru
          _
        // Predicated region
        $region65: #{tpu_custom_call.1} parent=59 // pred_check
          %p358 = pneg %p173
        $region66: #{tpu_custom_call.1} parent=59 // pred_check_branch
          %360 = sbr.rel (%p358) target = $region68
        $region67: #{tpu_custom_call.1} parent=59 // pred_region
          %361 = dma.done [#allocation9], 3072
        $region68: #{tpu_custom_call.1} parent=59 // pred_fallthru
          _
        // Predicated region
        $region69: #{tpu_custom_call.1} parent=59 // pred_check
          %p362 = pneg %p215
        $region70: #{tpu_custom_call.1} parent=59 // pred_check_branch
          %364 = sbr.rel (%p362) target = $region72
        $region71: #{tpu_custom_call.1} parent=59 // pred_region
          %365 = dma.done [#allocation9], 1024
        $region72: #{tpu_custom_call.1} parent=59 // pred_fallthru
          _
        %s366 = smul.u32 16, %s26
        %p367 = scmp.lt.s32.totalorder %s366, 31
        %s368 = scalar_select %p367, %s366, 31
        %s369 = smul.addr %s368, 8
        %s370 = scalar_lea.vmem %s0, %s369
        %p371 = pneg %p47
        %p372 = pneg %p44
        %p373 = pneg %p68
        %p374 = pneg %p65
        %p375 = pneg %p89
        %p376 = pneg %p86
        %p377 = pneg %p110
        %p378 = pneg %p107
        %p379 = pneg %p131
        %p380 = pneg %p128
        %p381 = pneg %p152
        %p382 = pneg %p149
        %p383 = pneg %p173
        %p384 = pneg %p170
        %p385 = pneg %p194
        %p386 = pneg %p191
        %p387 = pneg %p215
        %p388 = pneg %p212
        %p389 = pneg %p236
        %p390 = pneg %p233
        %p391 = pneg %p262
        %p392 = pneg %p259
        %s393 = sand.u32 %s249, 1
        %s394 = scalar_lea.sflag [#allocation7], %s393
        %s395 = sand.u32 %s249, 1
        %s396 = smul.addr %s395, 8
        %s397 = scalar_lea.vmem [#allocation11], %s396
        %s398 = smul.u32 16, %s26
        %p399 = scmp.lt.s32.totalorder %s398, 31
        %s400 = scalar_select %p399, %s398, 31
        %s401 = smul.addr %s400, 8
        %s402 = scalar_lea.vmem %s0, %s401
        %s403 = smul.u32 16, %s26
        %v405 = vld [vmem:[%s402] sm:$0xff]
        %v406 = vld [vmem:[%s402 + $0x8] sm:$0xff]
        %v407 = vld [vmem:[%s402 + $0x10] sm:$0xff]
        %v408 = vld [vmem:[%s402 + $0x18] sm:$0xff]
        %v409 = vld [vmem:[%s402 + $0x20] sm:$0xff]
        %v410 = vld [vmem:[%s402 + $0x28] sm:$0xff]
        %v411 = vld [vmem:[%s402 + $0x30] sm:$0xff]
        %v412 = vld [vmem:[%s402 + $0x38] sm:$0xff]
        %v413 = vld [vmem:[%s402 + $0x40] sm:$0xff]
        %v414 = vld [vmem:[%s402 + $0x48] sm:$0xff]
        %v415 = vld [vmem:[%s402 + $0x50] sm:$0xff]
        %v416 = vld [vmem:[%s402 + $0x58] sm:$0xff]
        %v417 = vld [vmem:[%s402 + $0x60] sm:$0xff]
        %v418 = vld [vmem:[%s402 + $0x68] sm:$0xff]
        %v419 = vld [vmem:[%s402 + $0x70] sm:$0xff]
        %v420 = vld [vmem:[%s402 + $0x78] sm:$0xff]
        %v421 = vlaneseq
        %v422 = vand.u32 %v421, 127
        %423 = vset.pattern.permute.xlu0 0
        %424 = vperm.xlu0 %423, %v405
        %v425 = vpop.permute.xlu0 %424
        %426 = vset.pattern.permute.xlu0 0
        %427 = vperm.xlu0 %426, %v406
        %v428 = vpop.permute.xlu0 %427
        %429 = vset.pattern.permute.xlu0 0
        %430 = vperm.xlu0 %429, %v407
        %v431 = vpop.permute.xlu0 %430
        %432 = vset.pattern.permute.xlu0 0
        %433 = vperm.xlu0 %432, %v408
        %v434 = vpop.permute.xlu0 %433
        %435 = vset.pattern.permute.xlu0 0
        %436 = vperm.xlu0 %435, %v409
        %v437 = vpop.permute.xlu0 %436
        %438 = vset.pattern.permute.xlu0 0
        %439 = vperm.xlu0 %438, %v410
        %v440 = vpop.permute.xlu0 %439
        %441 = vset.pattern.permute.xlu0 0
        %442 = vperm.xlu0 %441, %v411
        %v443 = vpop.permute.xlu0 %442
        %444 = vset.pattern.permute.xlu0 0
        %445 = vperm.xlu0 %444, %v412
        %v446 = vpop.permute.xlu0 %445
        %447 = vset.pattern.permute.xlu0 0
        %448 = vperm.xlu0 %447, %v413
        %v449 = vpop.permute.xlu0 %448
        %450 = vset.pattern.permute.xlu0 0
        %451 = vperm.xlu0 %450, %v414
        %v452 = vpop.permute.xlu0 %451
        %453 = vset.pattern.permute.xlu0 0
        %454 = vperm.xlu0 %453, %v415
        %v455 = vpop.permute.xlu0 %454
        %456 = vset.pattern.permute.xlu0 0
        %457 = vperm.xlu0 %456, %v416
        %v458 = vpop.permute.xlu0 %457
        %459 = vset.pattern.permute.xlu0 0
        %460 = vperm.xlu0 %459, %v417
        %v461 = vpop.permute.xlu0 %460
        %462 = vset.pattern.permute.xlu0 0
        %463 = vperm.xlu0 %462, %v418
        %v464 = vpop.permute.xlu0 %463
        %465 = vset.pattern.permute.xlu0 0
        %466 = vperm.xlu0 %465, %v419
        %v467 = vpop.permute.xlu0 %466
        %468 = vset.pattern.permute.xlu0 0
        %469 = vperm.xlu0 %468, %v420
        %v470 = vpop.permute.xlu0 %469
        %vm471 = vcmp.eq.s32.totalorder %v425, %v422
        %vm472 = vcmp.eq.s32.totalorder %v428, %v422
        %vm473 = vcmp.eq.s32.totalorder %v431, %v422
        %vm474 = vcmp.eq.s32.totalorder %v434, %v422
        %vm475 = vcmp.eq.s32.totalorder %v437, %v422
        %vm476 = vcmp.eq.s32.totalorder %v440, %v422
        %vm477 = vcmp.eq.s32.totalorder %v443, %v422
        %vm478 = vcmp.eq.s32.totalorder %v446, %v422
        %vm479 = vcmp.eq.s32.totalorder %v449, %v422
        %vm480 = vcmp.eq.s32.totalorder %v452, %v422
        %vm481 = vcmp.eq.s32.totalorder %v455, %v422
        %vm482 = vcmp.eq.s32.totalorder %v458, %v422
        %vm483 = vcmp.eq.s32.totalorder %v461, %v422
        %vm484 = vcmp.eq.s32.totalorder %v464, %v422
        %vm485 = vcmp.eq.s32.totalorder %v467, %v422
        %vm486 = vcmp.eq.s32.totalorder %v470, %v422
        %v487 = vsel %vm471, 1.0, 0.0
        %v488 = vsel %vm472, 1.0, 0.0
        %v489 = vsel %vm473, 1.0, 0.0
        %v490 = vsel %vm474, 1.0, 0.0
        %v491 = vsel %vm475, 1.0, 0.0
        %v492 = vsel %vm476, 1.0, 0.0
        %v493 = vsel %vm477, 1.0, 0.0
        %v494 = vsel %vm478, 1.0, 0.0
        %v495 = vsel %vm479, 1.0, 0.0
        %v496 = vsel %vm480, 1.0, 0.0
        %v497 = vsel %vm481, 1.0, 0.0
        %v498 = vsel %vm482, 1.0, 0.0
        %v499 = vsel %vm483, 1.0, 0.0
        %v500 = vsel %vm484, 1.0, 0.0
        %v501 = vsel %vm485, 1.0, 0.0
        %v502 = vsel %vm486, 1.0, 0.0
        %v503 = vpack.c.bf16 %v488, %v487
        %v504 = vpack.c.bf16 %v490, %v489
        %v505 = vpack.c.bf16 %v492, %v491
        %v506 = vpack.c.bf16 %v494, %v493
        %v507 = vpack.c.bf16 %v496, %v495
        %v508 = vpack.c.bf16 %v498, %v497
        %v509 = vpack.c.bf16 %v500, %v499
        %v510 = vpack.c.bf16 %v502, %v501
        %v511 = vld [vmem:[%s1] sm:$0xf]
        %v512 = vld [vmem:[%s1 + $0x4] sm:$0xf]
        %v513 = vld [vmem:[%s1 + $0x8] sm:$0xf]
        %v514 = vld [vmem:[%s1 + $0xc] sm:$0xf]
        %v515 = vld [vmem:[%s1 + $0x10] sm:$0xf]
        %v516 = vld [vmem:[%s1 + $0x14] sm:$0xf]
        %v517 = vld [vmem:[%s1 + $0x18] sm:$0xf]
        %v518 = vld [vmem:[%s1 + $0x1c] sm:$0xf]
        %v519 = vld [vmem:[%s1 + $0x20] sm:$0xf]
        %v520 = vld [vmem:[%s1 + $0x24] sm:$0xf]
        %v521 = vld [vmem:[%s1 + $0x28] sm:$0xf]
        %v522 = vld [vmem:[%s1 + $0x2c] sm:$0xf]
        %v523 = vld [vmem:[%s1 + $0x30] sm:$0xf]
        %v524 = vld [vmem:[%s1 + $0x34] sm:$0xf]
        %v525 = vld [vmem:[%s1 + $0x38] sm:$0xf]
        %v526 = vld [vmem:[%s1 + $0x3c] sm:$0xf]
        %v543 = vunpack.c.l.b16 %v511
        %v544 = vunpack.c.l.b16 %v512
        %v545 = vunpack.c.l.b16 %v513
        %v546 = vunpack.c.l.b16 %v514
        %v547 = vunpack.c.l.b16 %v515
        %v548 = vunpack.c.l.b16 %v516
        %v549 = vunpack.c.l.b16 %v517
        %v550 = vunpack.c.l.b16 %v518
        %v551 = vunpack.c.l.b16 %v519
        %v552 = vunpack.c.l.b16 %v520
        %v553 = vunpack.c.l.b16 %v521
        %v554 = vunpack.c.l.b16 %v522
        %v555 = vunpack.c.l.b16 %v523
        %v556 = vunpack.c.l.b16 %v524
        %v557 = vunpack.c.l.b16 %v525
        %v558 = vunpack.c.l.b16 %v526
        %v559 = vpack.c.b16 %v544, %v543
        %v560 = vpack.c.b16 %v546, %v545
        %v561 = vpack.c.b16 %v548, %v547
        %v562 = vpack.c.b16 %v550, %v549
        %v563 = vpack.c.b16 %v552, %v551
        %v564 = vpack.c.b16 %v554, %v553
        %v565 = vpack.c.b16 %v556, %v555
        %v566 = vpack.c.b16 %v558, %v557
        %575 = vmatprep.subr.bf16.mxu0 0
        %576 = vmatpush1.bf16.msra.mxu0 %v559
        %577 = vmatprep.subr.bf16.mxu0 0
        %578 = vmatpush1.bf16.msra.mxu0 %v560
        %579 = vmatprep.subr.bf16.mxu0 0
        %580 = vmatpush1.bf16.msra.mxu0 %v561
        %581 = vmatprep.subr.bf16.mxu0 0
        %582 = vmatpush1.bf16.msra.mxu0 %v562
        %583 = vmatprep.subr.bf16.mxu0 0
        %584 = vmatpush1.bf16.msra.mxu0 %v563
        %585 = vmatprep.subr.bf16.mxu0 0
        %586 = vmatpush1.bf16.msra.mxu0 %v564
        %587 = vmatprep.subr.bf16.mxu0 0
        %588 = vmatpush1.bf16.msra.mxu0 %v565
        %589 = vmatprep.subr.bf16.mxu0 0
        %590 = vmatpush1.bf16.msra.mxu0 %v566
        %591 = vmatprep.subr.bf16.mxu0 0
        %592 = vmatpush1.bf16.msra.mxu0 0
        %593 = vmatprep.subr.bf16.mxu0 0
        %594 = vmatpush1.bf16.msra.mxu0 0
        %595 = vmatprep.subr.bf16.mxu0 0
        %596 = vmatpush1.bf16.msra.mxu0 0
        %597 = vmatprep.subr.bf16.mxu0 0
        %598 = vmatpush1.bf16.msra.mxu0 0
        %599 = vmatprep.subr.bf16.mxu0 0
        %600 = vmatpush1.bf16.msra.mxu0 0
        %601 = vmatprep.subr.bf16.mxu0 0
        %602 = vmatpush1.bf16.msra.mxu0 0
        %603 = vmatprep.subr.bf16.mxu0 0
        %604 = vmatpush1.bf16.msra.mxu0 0
        %605 = vmatprep.subr.bf16.mxu0 0
        %606 = vmatpush1.bf16.msra.mxu0 0
        %607 = vmatprep.mubr.bf16.mxu0 0
        %608 = vmatmul.mubr.bf16.gmra.mrb[0].mxu0 %v503
        %v609 = vpop.f32.mrb[0].mxu0
        %v610 = vadd.f32 0.0, %v609
        %v611 = vpop.f32.mrb[0].mxu0
        %v612 = vpop.f32.mrb[0].mxu0
        %v613 = vadd.f32 0.0, %v612
        %v614 = vpop.f32.mrb[0].mxu0
        %615 = vmatprep.mubr.bf16.mxu0 0
        %616 = vmatmul.mubr.bf16.gmra.mrb[0].mxu0 %v504
        %v617 = vpop.f32.mrb[0].mxu0
        %v618 = vadd.f32 0.0, %v617
        %v619 = vpop.f32.mrb[0].mxu0
        %v620 = vpop.f32.mrb[0].mxu0
        %v621 = vadd.f32 0.0, %v620
        %v622 = vpop.f32.mrb[0].mxu0
        %623 = vmatprep.mubr.bf16.mxu0 0
        %624 = vmatmul.mubr.bf16.gmra.mrb[0].mxu0 %v505
        %v625 = vpop.f32.mrb[0].mxu0
        %v626 = vadd.f32 0.0, %v625
        %v627 = vpop.f32.mrb[0].mxu0
        %v628 = vpop.f32.mrb[0].mxu0
        %v629 = vadd.f32 0.0, %v628
        %v630 = vpop.f32.mrb[0].mxu0
        %631 = vmatprep.mubr.bf16.mxu0 0
        %632 = vmatmul.mubr.bf16.gmra.mrb[0].mxu0 %v506
        %v633 = vpop.f32.mrb[0].mxu0
        %v634 = vadd.f32 0.0, %v633
        %v635 = vpop.f32.mrb[0].mxu0
        %v636 = vpop.f32.mrb[0].mxu0
        %v637 = vadd.f32 0.0, %v636
        %v638 = vpop.f32.mrb[0].mxu0
        %639 = vmatprep.mubr.bf16.mxu0 0
        %640 = vmatmul.mubr.bf16.gmra.mrb[0].mxu0 %v507
        %v641 = vpop.f32.mrb[0].mxu0
        %v642 = vadd.f32 0.0, %v641
        %v643 = vpop.f32.mrb[0].mxu0
        %v644 = vpop.f32.mrb[0].mxu0
        %v645 = vadd.f32 0.0, %v644
        %v646 = vpop.f32.mrb[0].mxu0
        %647 = vmatprep.mubr.bf16.mxu0 0
        %648 = vmatmul.mubr.bf16.gmra.mrb[0].mxu0 %v508
        %v649 = vpop.f32.mrb[0].mxu0
        %v650 = vadd.f32 0.0, %v649
        %v651 = vpop.f32.mrb[0].mxu0
        %v652 = vpop.f32.mrb[0].mxu0
        %v653 = vadd.f32 0.0, %v652
        %v654 = vpop.f32.mrb[0].mxu0
        %655 = vmatprep.mubr.bf16.mxu0 0
        %656 = vmatmul.mubr.bf16.gmra.mrb[0].mxu0 %v509
        %v657 = vpop.f32.mrb[0].mxu0
        %v658 = vadd.f32 0.0, %v657
        %v659 = vpop.f32.mrb[0].mxu0
        %v660 = vpop.f32.mrb[0].mxu0
        %v661 = vadd.f32 0.0, %v660
        %v662 = vpop.f32.mrb[0].mxu0
        %663 = vmatprep.mubr.bf16.mxu0 0
        %664 = vmatmul.mubr.bf16.gmra.mrb[0].mxu0 %v510
        %v665 = vpop.f32.mrb[0].mxu0
        %v666 = vadd.f32 0.0, %v665
        %v667 = vpop.f32.mrb[0].mxu0
        %v668 = vpop.f32.mrb[0].mxu0
        %v669 = vadd.f32 0.0, %v668
        %v670 = vpop.f32.mrb[0].mxu0
        %671 = vdwg.mxu0
        %v672 = vpack.c.bf16 %v613, %v610
        %v673 = vpack.c.bf16 %v621, %v618
        %v674 = vpack.c.bf16 %v629, %v626
        %v675 = vpack.c.bf16 %v637, %v634
        %v676 = vpack.c.bf16 %v645, %v642
        %v677 = vpack.c.bf16 %v653, %v650
        %v678 = vpack.c.bf16 %v661, %v658
        %v679 = vpack.c.bf16 %v669, %v666
        %v680 = vld [vmem:[%s2] sm:$0xff]
        %v681 = vld [vmem:[%s2 + $0x8] sm:$0xf]
        %v682 = vld [vmem:[%s2 + $0xc] sm:$0xff]
        %v683 = vld [vmem:[%s2 + $0x14] sm:$0xf]
        %v684 = vld [vmem:[%s2 + $0x18] sm:$0xff]
        %v685 = vld [vmem:[%s2 + $0x20] sm:$0xf]
        %v686 = vld [vmem:[%s2 + $0x24] sm:$0xff]
        %v687 = vld [vmem:[%s2 + $0x2c] sm:$0xf]
        %v688 = vld [vmem:[%s2 + $0x30] sm:$0xff]
        %v689 = vld [vmem:[%s2 + $0x38] sm:$0xf]
        %v690 = vld [vmem:[%s2 + $0x3c] sm:$0xff]
        %v691 = vld [vmem:[%s2 + $0x44] sm:$0xf]
        %v692 = vld [vmem:[%s2 + $0x48] sm:$0xff]
        %v693 = vld [vmem:[%s2 + $0x50] sm:$0xf]
        %v694 = vld [vmem:[%s2 + $0x54] sm:$0xff]
        %v695 = vld [vmem:[%s2 + $0x5c] sm:$0xf]
        %v696 = vld [vmem:[%s2 + $0x60] sm:$0xff]
        %v697 = vld [vmem:[%s2 + $0x68] sm:$0xf]
        %v698 = vld [vmem:[%s2 + $0x6c] sm:$0xff]
        %v699 = vld [vmem:[%s2 + $0x74] sm:$0xf]
        %v700 = vld [vmem:[%s2 + $0x78] sm:$0xff]
        %v701 = vld [vmem:[%s2 + $0x80] sm:$0xf]
        %v702 = vld [vmem:[%s2 + $0x84] sm:$0xff]
        %v703 = vld [vmem:[%s2 + $0x8c] sm:$0xf]
        %v704 = vld [vmem:[%s2 + $0x90] sm:$0xff]
        %v705 = vld [vmem:[%s2 + $0x98] sm:$0xf]
        %v706 = vld [vmem:[%s2 + $0x9c] sm:$0xff]
        %v707 = vld [vmem:[%s2 + $0xa4] sm:$0xf]
        %v708 = vld [vmem:[%s2 + $0xa8] sm:$0xff]
        %v709 = vld [vmem:[%s2 + $0xb0] sm:$0xf]
        %v710 = vld [vmem:[%s2 + $0xb4] sm:$0xff]
        %v711 = vld [vmem:[%s2 + $0xbc] sm:$0xf]
        %v744 = vunpack.c.l.b16 %v680
        %v745 = vunpack.c.h.b16 %v680
        %v746 = vunpack.c.l.b16 %v681
        %v747 = vunpack.c.l.b16 %v682
        %v748 = vunpack.c.h.b16 %v682
        %v749 = vunpack.c.l.b16 %v683
        %v750 = vunpack.c.l.b16 %v684
        %v751 = vunpack.c.h.b16 %v684
        %v752 = vunpack.c.l.b16 %v685
        %v753 = vunpack.c.l.b16 %v686
        %v754 = vunpack.c.h.b16 %v686
        %v755 = vunpack.c.l.b16 %v687
        %v756 = vunpack.c.l.b16 %v688
        %v757 = vunpack.c.h.b16 %v688
        %v758 = vunpack.c.l.b16 %v689
        %v759 = vunpack.c.l.b16 %v690
        %v760 = vunpack.c.h.b16 %v690
        %v761 = vunpack.c.l.b16 %v691
        %v762 = vunpack.c.l.b16 %v692
        %v763 = vunpack.c.h.b16 %v692
        %v764 = vunpack.c.l.b16 %v693
        %v765 = vunpack.c.l.b16 %v694
        %v766 = vunpack.c.h.b16 %v694
        %v767 = vunpack.c.l.b16 %v695
        %v768 = vunpack.c.l.b16 %v696
        %v769 = vunpack.c.h.b16 %v696
        %v770 = vunpack.c.l.b16 %v697
        %v771 = vunpack.c.l.b16 %v698
        %v772 = vunpack.c.h.b16 %v698
        %v773 = vunpack.c.l.b16 %v699
        %v774 = vunpack.c.l.b16 %v700
        %v775 = vunpack.c.h.b16 %v700
        %v776 = vunpack.c.l.b16 %v701
        %v777 = vunpack.c.l.b16 %v702
        %v778 = vunpack.c.h.b16 %v702
        %v779 = vunpack.c.l.b16 %v703
        %v780 = vunpack.c.l.b16 %v704
        %v781 = vunpack.c.h.b16 %v704
        %v782 = vunpack.c.l.b16 %v705
        %v783 = vunpack.c.l.b16 %v706
        %v784 = vunpack.c.h.b16 %v706
        %v785 = vunpack.c.l.b16 %v707
        %v786 = vunpack.c.l.b16 %v708
        %v787 = vunpack.c.h.b16 %v708
        %v788 = vunpack.c.l.b16 %v709
        %v789 = vunpack.c.l.b16 %v710
        %v790 = vunpack.c.h.b16 %v710
        %v791 = vunpack.c.l.b16 %v711
        %v792 = vpack.c.b16 %v747, %v744
        %v793 = vpack.c.b16 %v748, %v745
        %v794 = vpack.c.b16 %v749, %v746
        %v795 = vpack.c.b16 %v753, %v750
        %v796 = vpack.c.b16 %v754, %v751
        %v797 = vpack.c.b16 %v755, %v752
        %v798 = vpack.c.b16 %v759, %v756
        %v799 = vpack.c.b16 %v760, %v757
        %v800 = vpack.c.b16 %v761, %v758
        %v801 = vpack.c.b16 %v765, %v762
        %v802 = vpack.c.b16 %v766, %v763
        %v803 = vpack.c.b16 %v767, %v764
        %v804 = vpack.c.b16 %v771, %v768
        %v805 = vpack.c.b16 %v772, %v769
        %v806 = vpack.c.b16 %v773, %v770
        %v807 = vpack.c.b16 %v777, %v774
        %v808 = vpack.c.b16 %v778, %v775
        %v809 = vpack.c.b16 %v779, %v776
        %v810 = vpack.c.b16 %v783, %v780
        %v811 = vpack.c.b16 %v784, %v781
        %v812 = vpack.c.b16 %v785, %v782
        %v813 = vpack.c.b16 %v789, %v786
        %v814 = vpack.c.b16 %v790, %v787
        %v815 = vpack.c.b16 %v791, %v788
        %840 = vmatprep.subr.bf16.mxu0 %v793
        %841 = vmatpush1.bf16.msra.mxu0 %v792
        %842 = vmatprep.subr.bf16.mxu0 %v796
        %843 = vmatpush1.bf16.msra.mxu0 %v795
        %844 = vmatprep.subr.bf16.mxu0 %v799
        %845 = vmatpush1.bf16.msra.mxu0 %v798
        %846 = vmatprep.subr.bf16.mxu0 %v802
        %847 = vmatpush1.bf16.msra.mxu0 %v801
        %848 = vmatprep.subr.bf16.mxu0 %v805
        %849 = vmatpush1.bf16.msra.mxu0 %v804
        %850 = vmatprep.subr.bf16.mxu0 %v808
        %851 = vmatpush1.bf16.msra.mxu0 %v807
        %852 = vmatprep.subr.bf16.mxu0 %v811
        %853 = vmatpush1.bf16.msra.mxu0 %v810
        %854 = vmatprep.subr.bf16.mxu0 %v814
        %855 = vmatpush1.bf16.msra.mxu0 %v813
        %856 = vmatprep.subr.bf16.mxu0 0
        %857 = vmatpush1.bf16.msra.mxu0 0
        %858 = vmatprep.subr.bf16.mxu0 0
        %859 = vmatpush1.bf16.msra.mxu0 0
        %860 = vmatprep.subr.bf16.mxu0 0
        %861 = vmatpush1.bf16.msra.mxu0 0
        %862 = vmatprep.subr.bf16.mxu0 0
        %863 = vmatpush1.bf16.msra.mxu0 0
        %864 = vmatprep.subr.bf16.mxu0 0
        %865 = vmatpush1.bf16.msra.mxu0 0
        %866 = vmatprep.subr.bf16.mxu0 0
        %867 = vmatpush1.bf16.msra.mxu0 0
        %868 = vmatprep.subr.bf16.mxu0 0
        %869 = vmatpush1.bf16.msra.mxu0 0
        %870 = vmatprep.subr.bf16.mxu0 0
        %871 = vmatpush1.bf16.msra.mxu0 0
        %872 = vmatprep.mubr.bf16.mxu0 0
        %873 = vmatmul.mubr.bf16.gmra.mrb[0].mxu0 %v672
        %v874 = vpop.f32.mrb[0].mxu0
        %v875 = vadd.f32 0.0, %v874
        %v876 = vpop.f32.mrb[0].mxu0
        %v877 = vadd.f32 0.0, %v876
        %v878 = vpop.f32.mrb[0].mxu0
        %v879 = vadd.f32 0.0, %v878
        %v880 = vpop.f32.mrb[0].mxu0
        %v881 = vadd.f32 0.0, %v880
        %882 = vmatprep.mubr.bf16.mxu0 0
        %883 = vmatmul.mubr.bf16.gmra.mrb[0].mxu0 %v673
        %v884 = vpop.f32.mrb[0].mxu0
        %v885 = vadd.f32 0.0, %v884
        %v886 = vpop.f32.mrb[0].mxu0
        %v887 = vadd.f32 0.0, %v886
        %v888 = vpop.f32.mrb[0].mxu0
        %v889 = vadd.f32 0.0, %v888
        %v890 = vpop.f32.mrb[0].mxu0
        %v891 = vadd.f32 0.0, %v890
        %892 = vmatprep.mubr.bf16.mxu0 0
        %893 = vmatmul.mubr.bf16.gmra.mrb[0].mxu0 %v674
        %v894 = vpop.f32.mrb[0].mxu0
        %v895 = vadd.f32 0.0, %v894
        %v896 = vpop.f32.mrb[0].mxu0
        %v897 = vadd.f32 0.0, %v896
        %v898 = vpop.f32.mrb[0].mxu0
        %v899 = vadd.f32 0.0, %v898
        %v900 = vpop.f32.mrb[0].mxu0
        %v901 = vadd.f32 0.0, %v900
        %902 = vmatprep.mubr.bf16.mxu0 0
        %903 = vmatmul.mubr.bf16.gmra.mrb[0].mxu0 %v675
        %v904 = vpop.f32.mrb[0].mxu0
        %v905 = vadd.f32 0.0, %v904
        %v906 = vpop.f32.mrb[0].mxu0
        %v907 = vadd.f32 0.0, %v906
        %v908 = vpop.f32.mrb[0].mxu0
        %v909 = vadd.f32 0.0, %v908
        %v910 = vpop.f32.mrb[0].mxu0
        %v911 = vadd.f32 0.0, %v910
        %912 = vmatprep.mubr.bf16.mxu0 0
        %913 = vmatmul.mubr.bf16.gmra.mrb[0].mxu0 %v676
        %v914 = vpop.f32.mrb[0].mxu0
        %v915 = vadd.f32 0.0, %v914
        %v916 = vpop.f32.mrb[0].mxu0
        %v917 = vadd.f32 0.0, %v916
        %v918 = vpop.f32.mrb[0].mxu0
        %v919 = vadd.f32 0.0, %v918
        %v920 = vpop.f32.mrb[0].mxu0
        %v921 = vadd.f32 0.0, %v920
        %922 = vmatprep.mubr.bf16.mxu0 0
        %923 = vmatmul.mubr.bf16.gmra.mrb[0].mxu0 %v677
        %v924 = vpop.f32.mrb[0].mxu0
        %v925 = vadd.f32 0.0, %v924
        %v926 = vpop.f32.mrb[0].mxu0
        %v927 = vadd.f32 0.0, %v926
        %v928 = vpop.f32.mrb[0].mxu0
        %v929 = vadd.f32 0.0, %v928
        %v930 = vpop.f32.mrb[0].mxu0
        %v931 = vadd.f32 0.0, %v930
        %932 = vmatprep.mubr.bf16.mxu0 0
        %933 = vmatmul.mubr.bf16.gmra.mrb[0].mxu0 %v678
        %v934 = vpop.f32.mrb[0].mxu0
        %v935 = vadd.f32 0.0, %v934
        %v936 = vpop.f32.mrb[0].mxu0
        %v937 = vadd.f32 0.0, %v936
        %v938 = vpop.f32.mrb[0].mxu0
        %v939 = vadd.f32 0.0, %v938
        %v940 = vpop.f32.mrb[0].mxu0
        %v941 = vadd.f32 0.0, %v940
        %942 = vmatprep.mubr.bf16.mxu0 0
        %943 = vmatmul.mubr.bf16.gmra.mrb[0].mxu0 %v679
        %v944 = vpop.f32.mrb[0].mxu0
        %v945 = vadd.f32 0.0, %v944
        %v946 = vpop.f32.mrb[0].mxu0
        %v947 = vadd.f32 0.0, %v946
        %v948 = vpop.f32.mrb[0].mxu0
        %v949 = vadd.f32 0.0, %v948
        %v950 = vpop.f32.mrb[0].mxu0
        %v951 = vadd.f32 0.0, %v950
        %952 = vdwg.mxu0
        %953 = vmatprep.subr.bf16.mxu0 0
        %954 = vmatpush1.bf16.msra.mxu0 %v794
        %955 = vmatprep.subr.bf16.mxu0 0
        %956 = vmatpush1.bf16.msra.mxu0 %v797
        %957 = vmatprep.subr.bf16.mxu0 0
        %958 = vmatpush1.bf16.msra.mxu0 %v800
        %959 = vmatprep.subr.bf16.mxu0 0
        %960 = vmatpush1.bf16.msra.mxu0 %v803
        %961 = vmatprep.subr.bf16.mxu0 0
        %962 = vmatpush1.bf16.msra.mxu0 %v806
        %963 = vmatprep.subr.bf16.mxu0 0
        %964 = vmatpush1.bf16.msra.mxu0 %v809
        %965 = vmatprep.subr.bf16.mxu0 0
        %966 = vmatpush1.bf16.msra.mxu0 %v812
        %967 = vmatprep.subr.bf16.mxu0 0
        %968 = vmatpush1.bf16.msra.mxu0 %v815
        %969 = vmatprep.subr.bf16.mxu0 0
        %970 = vmatpush1.bf16.msra.mxu0 0
        %971 = vmatprep.subr.bf16.mxu0 0
        %972 = vmatpush1.bf16.msra.mxu0 0
        %973 = vmatprep.subr.bf16.mxu0 0
        %974 = vmatpush1.bf16.msra.mxu0 0
        %975 = vmatprep.subr.bf16.mxu0 0
        %976 = vmatpush1.bf16.msra.mxu0 0
        %977 = vmatprep.subr.bf16.mxu0 0
        %978 = vmatpush1.bf16.msra.mxu0 0
        %979 = vmatprep.subr.bf16.mxu0 0
        %980 = vmatpush1.bf16.msra.mxu0 0
        %981 = vmatprep.subr.bf16.mxu0 0
        %982 = vmatpush1.bf16.msra.mxu0 0
        %983 = vmatprep.subr.bf16.mxu0 0
        %984 = vmatpush1.bf16.msra.mxu0 0
        %985 = vmatprep.mubr.bf16.mxu0 0
        %986 = vmatmul.mubr.bf16.gmra.mrb[0].mxu0 %v672
        %v987 = vpop.f32.mrb[0].mxu0
        %v988 = vadd.f32 0.0, %v987
        %v989 = vpop.f32.mrb[0].mxu0
        %v990 = vpop.f32.mrb[0].mxu0
        %v991 = vadd.f32 0.0, %v990
        %v992 = vpop.f32.mrb[0].mxu0
        %993 = vmatprep.mubr.bf16.mxu0 0
        %994 = vmatmul.mubr.bf16.gmra.mrb[0].mxu0 %v673
        %v995 = vpop.f32.mrb[0].mxu0
        %v996 = vadd.f32 0.0, %v995
        %v997 = vpop.f32.mrb[0].mxu0
        %v998 = vpop.f32.mrb[0].mxu0
        %v999 = vadd.f32 0.0, %v998
        %v1000 = vpop.f32.mrb[0].mxu0
        %1001 = vmatprep.mubr.bf16.mxu0 0
        %1002 = vmatmul.mubr.bf16.gmra.mrb[0].mxu0 %v674
        %v1003 = vpop.f32.mrb[0].mxu0
        %v1004 = vadd.f32 0.0, %v1003
        %v1005 = vpop.f32.mrb[0].mxu0
        %v1006 = vpop.f32.mrb[0].mxu0
        %v1007 = vadd.f32 0.0, %v1006
        %v1008 = vpop.f32.mrb[0].mxu0
        %1009 = vmatprep.mubr.bf16.mxu0 0
        %1010 = vmatmul.mubr.bf16.gmra.mrb[0].mxu0 %v675
        %v1011 = vpop.f32.mrb[0].mxu0
        %v1012 = vadd.f32 0.0, %v1011
        %v1013 = vpop.f32.mrb[0].mxu0
        %v1014 = vpop.f32.mrb[0].mxu0
        %v1015 = vadd.f32 0.0, %v1014
        %v1016 = vpop.f32.mrb[0].mxu0
        %1017 = vmatprep.mubr.bf16.mxu0 0
        %1018 = vmatmul.mubr.bf16.gmra.mrb[0].mxu0 %v676
        %v1019 = vpop.f32.mrb[0].mxu0
        %v1020 = vadd.f32 0.0, %v1019
        %v1021 = vpop.f32.mrb[0].mxu0
        %v1022 = vpop.f32.mrb[0].mxu0
        %v1023 = vadd.f32 0.0, %v1022
        %v1024 = vpop.f32.mrb[0].mxu0
        %1025 = vmatprep.mubr.bf16.mxu0 0
        %1026 = vmatmul.mubr.bf16.gmra.mrb[0].mxu0 %v677
        %v1027 = vpop.f32.mrb[0].mxu0
        %v1028 = vadd.f32 0.0, %v1027
        %v1029 = vpop.f32.mrb[0].mxu0
        %v1030 = vpop.f32.mrb[0].mxu0
        %v1031 = vadd.f32 0.0, %v1030
        %v1032 = vpop.f32.mrb[0].mxu0
        %1033 = vmatprep.mubr.bf16.mxu0 0
        %1034 = vmatmul.mubr.bf16.gmra.mrb[0].mxu0 %v678
        %v1035 = vpop.f32.mrb[0].mxu0
        %v1036 = vadd.f32 0.0, %v1035
        %v1037 = vpop.f32.mrb[0].mxu0
        %v1038 = vpop.f32.mrb[0].mxu0
        %v1039 = vadd.f32 0.0, %v1038
        %v1040 = vpop.f32.mrb[0].mxu0
        %1041 = vmatprep.mubr.bf16.mxu0 0
        %1042 = vmatmul.mubr.bf16.gmra.mrb[0].mxu0 %v679
        %v1043 = vpop.f32.mrb[0].mxu0
        %v1044 = vadd.f32 0.0, %v1043
        %v1045 = vpop.f32.mrb[0].mxu0
        %v1046 = vpop.f32.mrb[0].mxu0
        %v1047 = vadd.f32 0.0, %v1046
        %v1048 = vpop.f32.mrb[0].mxu0
        %1049 = vdwg.mxu0
        %v1050 = vlaneseq
        %v1051 = vshrl.u32 %v1050, 7
        %v1052 = vadd.s32 %v1051, 8
        %v1053 = vadd.s32 %v1051, 16
        %v1054 = vadd.s32 %v1051, 24
        %v1055 = vadd.s32 %v1051, 32
        %v1056 = vadd.s32 %v1051, 40
        %v1057 = vadd.s32 %v1051, 48
        %v1058 = vadd.s32 %v1051, 56
        %v1059 = vadd.s32 %v1051, 64
        %v1060 = vadd.s32 %v1051, 72
        %v1061 = vadd.s32 %v1051, 80
        %v1062 = vadd.s32 %v1051, 88
        %v1063 = vadd.s32 %v1051, 96
        %v1064 = vadd.s32 %v1051, 104
        %v1065 = vadd.s32 %v1051, 112
        %v1066 = vadd.s32 %v1051, 120
        %vm1067 = vcmp.lt.s32.totalorder %v1051, 0
        %v1068 = vsub.s32 0, %v1051
        %v1069 = vsel %vm1067, %v1068, %v1051
        %v1070 = vshrl.u32 %v1069, 4
        %v1071 = vand.u32 %v1069, 15
        %v1072 = vsub.s32 0, %v1071
        %v1073 = vsel %vm1067, %v1072, %v1071
        %vm1074 = vcmp.lt.s32.totalorder %v1052, 0
        %v1075 = vsub.s32 0, %v1052
        %v1076 = vsel %vm1074, %v1075, %v1052
        %v1077 = vshrl.u32 %v1076, 4
        %v1078 = vand.u32 %v1076, 15
        %v1079 = vsub.s32 0, %v1078
        %v1080 = vsel %vm1074, %v1079, %v1078
        %vm1081 = vcmp.lt.s32.totalorder %v1053, 0
        %v1082 = vsub.s32 0, %v1053
        %v1083 = vsel %vm1081, %v1082, %v1053
        %v1084 = vshrl.u32 %v1083, 4
        %v1085 = vand.u32 %v1083, 15
        %v1086 = vsub.s32 0, %v1085
        %v1087 = vsel %vm1081, %v1086, %v1085
        %vm1088 = vcmp.lt.s32.totalorder %v1054, 0
        %v1089 = vsub.s32 0, %v1054
        %v1090 = vsel %vm1088, %v1089, %v1054
        %v1091 = vshrl.u32 %v1090, 4
        %v1092 = vand.u32 %v1090, 15
        %v1093 = vsub.s32 0, %v1092
        %v1094 = vsel %vm1088, %v1093, %v1092
        %vm1095 = vcmp.lt.s32.totalorder %v1055, 0
        %v1096 = vsub.s32 0, %v1055
        %v1097 = vsel %vm1095, %v1096, %v1055
        %v1098 = vshrl.u32 %v1097, 4
        %v1099 = vand.u32 %v1097, 15
        %v1100 = vsub.s32 0, %v1099
        %v1101 = vsel %vm1095, %v1100, %v1099
        %vm1102 = vcmp.lt.s32.totalorder %v1056, 0
        %v1103 = vsub.s32 0, %v1056
        %v1104 = vsel %vm1102, %v1103, %v1056
        %v1105 = vshrl.u32 %v1104, 4
        %v1106 = vand.u32 %v1104, 15
        %v1107 = vsub.s32 0, %v1106
        %v1108 = vsel %vm1102, %v1107, %v1106
        %vm1109 = vcmp.lt.s32.totalorder %v1057, 0
        %v1110 = vsub.s32 0, %v1057
        %v1111 = vsel %vm1109, %v1110, %v1057
        %v1112 = vshrl.u32 %v1111, 4
        %v1113 = vand.u32 %v1111, 15
        %v1114 = vsub.s32 0, %v1113
        %v1115 = vsel %vm1109, %v1114, %v1113
        %vm1116 = vcmp.lt.s32.totalorder %v1058, 0
        %v1117 = vsub.s32 0, %v1058
        %v1118 = vsel %vm1116, %v1117, %v1058
        %v1119 = vshrl.u32 %v1118, 4
        %v1120 = vand.u32 %v1118, 15
        %v1121 = vsub.s32 0, %v1120
        %v1122 = vsel %vm1116, %v1121, %v1120
        %vm1123 = vcmp.lt.s32.totalorder %v1059, 0
        %v1124 = vsub.s32 0, %v1059
        %v1125 = vsel %vm1123, %v1124, %v1059
        %v1126 = vshrl.u32 %v1125, 4
        %v1127 = vand.u32 %v1125, 15
        %v1128 = vsub.s32 0, %v1127
        %v1129 = vsel %vm1123, %v1128, %v1127
        %vm1130 = vcmp.lt.s32.totalorder %v1060, 0
        %v1131 = vsub.s32 0, %v1060
        %v1132 = vsel %vm1130, %v1131, %v1060
        %v1133 = vshrl.u32 %v1132, 4
        %v1134 = vand.u32 %v1132, 15
        %v1135 = vsub.s32 0, %v1134
        %v1136 = vsel %vm1130, %v1135, %v1134
        %vm1137 = vcmp.lt.s32.totalorder %v1061, 0
        %v1138 = vsub.s32 0, %v1061
        %v1139 = vsel %vm1137, %v1138, %v1061
        %v1140 = vshrl.u32 %v1139, 4
        %v1141 = vand.u32 %v1139, 15
        %v1142 = vsub.s32 0, %v1141
        %v1143 = vsel %vm1137, %v1142, %v1141
        %vm1144 = vcmp.lt.s32.totalorder %v1062, 0
        %v1145 = vsub.s32 0, %v1062
        %v1146 = vsel %vm1144, %v1145, %v1062
        %v1147 = vshrl.u32 %v1146, 4
        %v1148 = vand.u32 %v1146, 15
        %v1149 = vsub.s32 0, %v1148
        %v1150 = vsel %vm1144, %v1149, %v1148
        %vm1151 = vcmp.lt.s32.totalorder %v1063, 0
        %v1152 = vsub.s32 0, %v1063
        %v1153 = vsel %vm1151, %v1152, %v1063
        %v1154 = vshrl.u32 %v1153, 4
        %v1155 = vand.u32 %v1153, 15
        %v1156 = vsub.s32 0, %v1155
        %v1157 = vsel %vm1151, %v1156, %v1155
        %vm1158 = vcmp.lt.s32.totalorder %v1064, 0
        %v1159 = vsub.s32 0, %v1064
        %v1160 = vsel %vm1158, %v1159, %v1064
        %v1161 = vshrl.u32 %v1160, 4
        %v1162 = vand.u32 %v1160, 15
        %v1163 = vsub.s32 0, %v1162
        %v1164 = vsel %vm1158, %v1163, %v1162
        %vm1165 = vcmp.lt.s32.totalorder %v1065, 0
        %v1166 = vsub.s32 0, %v1065
        %v1167 = vsel %vm1165, %v1166, %v1065
        %v1168 = vshrl.u32 %v1167, 4
        %v1169 = vand.u32 %v1167, 15
        %v1170 = vsub.s32 0, %v1169
        %v1171 = vsel %vm1165, %v1170, %v1169
        %vm1172 = vcmp.lt.s32.totalorder %v1066, 0
        %v1173 = vsub.s32 0, %v1066
        %v1174 = vsel %vm1172, %v1173, %v1066
        %v1175 = vshrl.u32 %v1174, 4
        %v1176 = vand.u32 %v1174, 15
        %v1177 = vsub.s32 0, %v1176
        %v1178 = vsel %vm1172, %v1177, %v1176
        %vm1179 = vcmp.ne.s32.totalorder %v1073, 0
        %vm1180 = vcmp.ne.s32.totalorder %v1080, 0
        %vm1181 = vcmp.ne.s32.totalorder %v1087, 0
        %vm1182 = vcmp.ne.s32.totalorder %v1094, 0
        %vm1183 = vcmp.ne.s32.totalorder %v1101, 0
        %vm1184 = vcmp.ne.s32.totalorder %v1108, 0
        %vm1185 = vcmp.ne.s32.totalorder %v1115, 0
        %vm1186 = vcmp.ne.s32.totalorder %v1122, 0
        %vm1187 = vcmp.ne.s32.totalorder %v1129, 0
        %vm1188 = vcmp.ne.s32.totalorder %v1136, 0
        %vm1189 = vcmp.ne.s32.totalorder %v1143, 0
        %vm1190 = vcmp.ne.s32.totalorder %v1150, 0
        %vm1191 = vcmp.ne.s32.totalorder %v1157, 0
        %vm1192 = vcmp.ne.s32.totalorder %v1164, 0
        %vm1193 = vcmp.ne.s32.totalorder %v1171, 0
        %vm1194 = vcmp.ne.s32.totalorder %v1178, 0
        %vm1195 = vcmp.lt.s32.totalorder %v1073, 0
        %vm1196 = vcmp.lt.s32.totalorder %v1080, 0
        %vm1197 = vcmp.lt.s32.totalorder %v1087, 0
        %vm1198 = vcmp.lt.s32.totalorder %v1094, 0
        %vm1199 = vcmp.lt.s32.totalorder %v1101, 0
        %vm1200 = vcmp.lt.s32.totalorder %v1108, 0
        %vm1201 = vcmp.lt.s32.totalorder %v1115, 0
        %vm1202 = vcmp.lt.s32.totalorder %v1122, 0
        %vm1203 = vcmp.lt.s32.totalorder %v1129, 0
        %vm1204 = vcmp.lt.s32.totalorder %v1136, 0
        %vm1205 = vcmp.lt.s32.totalorder %v1143, 0
        %vm1206 = vcmp.lt.s32.totalorder %v1150, 0
        %vm1207 = vcmp.lt.s32.totalorder %v1157, 0
        %vm1208 = vcmp.lt.s32.totalorder %v1164, 0
        %vm1209 = vcmp.lt.s32.totalorder %v1171, 0
        %vm1210 = vcmp.lt.s32.totalorder %v1178, 0
        %vm1211 = vmand %vm1195, %vm1179
        %vm1212 = vmand %vm1196, %vm1180
        %vm1213 = vmand %vm1197, %vm1181
        %vm1214 = vmand %vm1198, %vm1182
        %vm1215 = vmand %vm1199, %vm1183
        %vm1216 = vmand %vm1200, %vm1184
        %vm1217 = vmand %vm1201, %vm1185
        %vm1218 = vmand %vm1202, %vm1186
        %vm1219 = vmand %vm1203, %vm1187
        %vm1220 = vmand %vm1204, %vm1188
        %vm1221 = vmand %vm1205, %vm1189
        %vm1222 = vmand %vm1206, %vm1190
        %vm1223 = vmand %vm1207, %vm1191
        %vm1224 = vmand %vm1208, %vm1192
        %vm1225 = vmand %vm1209, %vm1193
        %vm1226 = vmand %vm1210, %vm1194
        %v1227 = vadd.s32 %v1073, 16
        %v1228 = vadd.s32 %v1080, 16
        %v1229 = vadd.s32 %v1087, 16
        %v1230 = vadd.s32 %v1094, 16
        %v1231 = vadd.s32 %v1101, 16
        %v1232 = vadd.s32 %v1108, 16
        %v1233 = vadd.s32 %v1115, 16
        %v1234 = vadd.s32 %v1122, 16
        %v1235 = vadd.s32 %v1129, 16
        %v1236 = vadd.s32 %v1136, 16
        %v1237 = vadd.s32 %v1143, 16
        %v1238 = vadd.s32 %v1150, 16
        %v1239 = vadd.s32 %v1157, 16
        %v1240 = vadd.s32 %v1164, 16
        %v1241 = vadd.s32 %v1171, 16
        %v1242 = vadd.s32 %v1178, 16
        %v1243 = vsel %vm1211, %v1227, %v1073
        %v1244 = vsel %vm1212, %v1228, %v1080
        %v1245 = vsel %vm1213, %v1229, %v1087
        %v1246 = vsel %vm1214, %v1230, %v1094
        %v1247 = vsel %vm1215, %v1231, %v1101
        %v1248 = vsel %vm1216, %v1232, %v1108
        %v1249 = vsel %vm1217, %v1233, %v1115
        %v1250 = vsel %vm1218, %v1234, %v1122
        %v1251 = vsel %vm1219, %v1235, %v1129
        %v1252 = vsel %vm1220, %v1236, %v1136
        %v1253 = vsel %vm1221, %v1237, %v1143
        %v1254 = vsel %vm1222, %v1238, %v1150
        %v1255 = vsel %vm1223, %v1239, %v1157
        %v1256 = vsel %vm1224, %v1240, %v1164
        %v1257 = vsel %vm1225, %v1241, %v1171
        %v1258 = vsel %vm1226, %v1242, %v1178
        %vm1259 = vcmp.eq.s32.totalorder %v1243, 0
        %vm1260 = vcmp.eq.s32.totalorder %v1244, 0
        %vm1261 = vcmp.eq.s32.totalorder %v1245, 0
        %vm1262 = vcmp.eq.s32.totalorder %v1246, 0
        %vm1263 = vcmp.eq.s32.totalorder %v1247, 0
        %vm1264 = vcmp.eq.s32.totalorder %v1248, 0
        %vm1265 = vcmp.eq.s32.totalorder %v1249, 0
        %vm1266 = vcmp.eq.s32.totalorder %v1250, 0
        %vm1267 = vcmp.eq.s32.totalorder %v1251, 0
        %vm1268 = vcmp.eq.s32.totalorder %v1252, 0
        %vm1269 = vcmp.eq.s32.totalorder %v1253, 0
        %vm1270 = vcmp.eq.s32.totalorder %v1254, 0
        %vm1271 = vcmp.eq.s32.totalorder %v1255, 0
        %vm1272 = vcmp.eq.s32.totalorder %v1256, 0
        %vm1273 = vcmp.eq.s32.totalorder %v1257, 0
        %vm1274 = vcmp.eq.s32.totalorder %v1258, 0
        %v1275 = vrot.slane %v875, 7
        %v1276 = vrot.slane %v879, 7
        %v1277 = vrot.slane %v885, 7
        %v1278 = vrot.slane %v889, 7
        %v1279 = vrot.slane %v895, 7
        %v1280 = vrot.slane %v899, 7
        %v1281 = vrot.slane %v905, 7
        %v1282 = vrot.slane %v909, 7
        %v1283 = vrot.slane %v915, 7
        %v1284 = vrot.slane %v919, 7
        %v1285 = vrot.slane %v925, 7
        %v1286 = vrot.slane %v929, 7
        %v1287 = vrot.slane %v935, 7
        %v1288 = vrot.slane %v939, 7
        %v1289 = vrot.slane %v945, 7
        %v1290 = vrot.slane %v949, 7
        %vm1291 = vcmp.lt.s32.totalorder %v1051, 1
        %v1292 = vsel %vm1291, %v1289, %v1290
        %v1293 = vsel %vm1291, %v1288, %v1289
        %v1294 = vsel %vm1291, %v1287, %v1288
        %v1295 = vsel %vm1291, %v1286, %v1287
        %v1296 = vsel %vm1291, %v1285, %v1286
        %v1297 = vsel %vm1291, %v1284, %v1285
        %v1298 = vsel %vm1291, %v1283, %v1284
        %v1299 = vsel %vm1291, %v1282, %v1283
        %v1300 = vsel %vm1291, %v1281, %v1282
        %v1301 = vsel %vm1291, %v1280, %v1281
        %v1302 = vsel %vm1291, %v1279, %v1280
        %v1303 = vsel %vm1291, %v1278, %v1279
        %v1304 = vsel %vm1291, %v1277, %v1278
        %v1305 = vsel %vm1291, %v1276, %v1277
        %v1306 = vsel %vm1291, %v1275, %v1276
        %v1307 = vsel %vm1291, %v1290, %v1275
        %v1308 = vsel %vm1259, 1, 0
        %v1309 = vsel %vm1260, 1, 0
        %v1310 = vsel %vm1261, 1, 0
        %v1311 = vsel %vm1262, 1, 0
        %v1312 = vsel %vm1263, 1, 0
        %v1313 = vsel %vm1264, 1, 0
        %v1314 = vsel %vm1265, 1, 0
        %v1315 = vsel %vm1266, 1, 0
        %v1316 = vsel %vm1267, 1, 0
        %v1317 = vsel %vm1268, 1, 0
        %v1318 = vsel %vm1269, 1, 0
        %v1319 = vsel %vm1270, 1, 0
        %v1320 = vsel %vm1271, 1, 0
        %v1321 = vsel %vm1272, 1, 0
        %v1322 = vsel %vm1273, 1, 0
        %v1323 = vsel %vm1274, 1, 0
        %vm1324 = vcmp.eq.s32.totalorder %v1308, 1
        %vm1325 = vcmp.eq.s32.totalorder %v1309, 1
        %vm1326 = vcmp.eq.s32.totalorder %v1310, 1
        %vm1327 = vcmp.eq.s32.totalorder %v1311, 1
        %vm1328 = vcmp.eq.s32.totalorder %v1312, 1
        %vm1329 = vcmp.eq.s32.totalorder %v1313, 1
        %vm1330 = vcmp.eq.s32.totalorder %v1314, 1
        %vm1331 = vcmp.eq.s32.totalorder %v1315, 1
        %vm1332 = vcmp.eq.s32.totalorder %v1316, 1
        %vm1333 = vcmp.eq.s32.totalorder %v1317, 1
        %vm1334 = vcmp.eq.s32.totalorder %v1318, 1
        %vm1335 = vcmp.eq.s32.totalorder %v1319, 1
        %vm1336 = vcmp.eq.s32.totalorder %v1320, 1
        %vm1337 = vcmp.eq.s32.totalorder %v1321, 1
        %vm1338 = vcmp.eq.s32.totalorder %v1322, 1
        %vm1339 = vcmp.eq.s32.totalorder %v1323, 1
        %v1340 = vsel %vm1324, 0.0, %v1307
        %v1341 = vsel %vm1325, 0.0, %v1306
        %v1342 = vsel %vm1326, 0.0, %v1305
        %v1343 = vsel %vm1327, 0.0, %v1304
        %v1344 = vsel %vm1328, 0.0, %v1303
        %v1345 = vsel %vm1329, 0.0, %v1302
        %v1346 = vsel %vm1330, 0.0, %v1301
        %v1347 = vsel %vm1331, 0.0, %v1300
        %v1348 = vsel %vm1332, 0.0, %v1299
        %v1349 = vsel %vm1333, 0.0, %v1298
        %v1350 = vsel %vm1334, 0.0, %v1297
        %v1351 = vsel %vm1335, 0.0, %v1296
        %v1352 = vsel %vm1336, 0.0, %v1295
        %v1353 = vsel %vm1337, 0.0, %v1294
        %v1354 = vsel %vm1338, 0.0, %v1293
        %v1355 = vsel %vm1339, 0.0, %v1292
        %vm1356 = vcmp.eq.s32.totalorder %v1243, 15
        %vm1357 = vcmp.eq.s32.totalorder %v1244, 15
        %vm1358 = vcmp.eq.s32.totalorder %v1245, 15
        %vm1359 = vcmp.eq.s32.totalorder %v1246, 15
        %vm1360 = vcmp.eq.s32.totalorder %v1247, 15
        %vm1361 = vcmp.eq.s32.totalorder %v1248, 15
        %vm1362 = vcmp.eq.s32.totalorder %v1249, 15
        %vm1363 = vcmp.eq.s32.totalorder %v1250, 15
        %vm1364 = vcmp.eq.s32.totalorder %v1251, 15
        %vm1365 = vcmp.eq.s32.totalorder %v1252, 15
        %vm1366 = vcmp.eq.s32.totalorder %v1253, 15
        %vm1367 = vcmp.eq.s32.totalorder %v1254, 15
        %vm1368 = vcmp.eq.s32.totalorder %v1255, 15
        %vm1369 = vcmp.eq.s32.totalorder %v1256, 15
        %vm1370 = vcmp.eq.s32.totalorder %v1257, 15
        %vm1371 = vcmp.eq.s32.totalorder %v1258, 15
        %v1372 = vrot.slane %v988, 1
        %v1373 = vrot.slane %v991, 1
        %v1374 = vrot.slane %v996, 1
        %v1375 = vrot.slane %v999, 1
        %v1376 = vrot.slane %v1004, 1
        %v1377 = vrot.slane %v1007, 1
        %v1378 = vrot.slane %v1012, 1
        %v1379 = vrot.slane %v1015, 1
        %v1380 = vrot.slane %v1020, 1
        %v1381 = vrot.slane %v1023, 1
        %v1382 = vrot.slane %v1028, 1
        %v1383 = vrot.slane %v1031, 1
        %v1384 = vrot.slane %v1036, 1
        %v1385 = vrot.slane %v1039, 1
        %v1386 = vrot.slane %v1044, 1
        %v1387 = vrot.slane %v1047, 1
        %vm1388 = vcmp.lt.s32.totalorder %v1051, 7
        %v1389 = vsel %vm1388, %v1386, %v1387
        %v1390 = vsel %vm1388, %v1385, %v1386
        %v1391 = vsel %vm1388, %v1384, %v1385
        %v1392 = vsel %vm1388, %v1383, %v1384
        %v1393 = vsel %vm1388, %v1382, %v1383
        %v1394 = vsel %vm1388, %v1381, %v1382
        %v1395 = vsel %vm1388, %v1380, %v1381
        %v1396 = vsel %vm1388, %v1379, %v1380
        %v1397 = vsel %vm1388, %v1378, %v1379
        %v1398 = vsel %vm1388, %v1377, %v1378
        %v1399 = vsel %vm1388, %v1376, %v1377
        %v1400 = vsel %vm1388, %v1375, %v1376
        %v1401 = vsel %vm1388, %v1374, %v1375
        %v1402 = vsel %vm1388, %v1373, %v1374
        %v1403 = vsel %vm1388, %v1372, %v1373
        %v1404 = vsel %vm1388, %v1387, %v1372
        %v1405 = vsel %vm1356, 1, 0
        %v1406 = vsel %vm1357, 1, 0
        %v1407 = vsel %vm1358, 1, 0
        %v1408 = vsel %vm1359, 1, 0
        %v1409 = vsel %vm1360, 1, 0
        %v1410 = vsel %vm1361, 1, 0
        %v1411 = vsel %vm1362, 1, 0
        %v1412 = vsel %vm1363, 1, 0
        %v1413 = vsel %vm1364, 1, 0
        %v1414 = vsel %vm1365, 1, 0
        %v1415 = vsel %vm1366, 1, 0
        %v1416 = vsel %vm1367, 1, 0
        %v1417 = vsel %vm1368, 1, 0
        %v1418 = vsel %vm1369, 1, 0
        %v1419 = vsel %vm1370, 1, 0
        %v1420 = vsel %vm1371, 1, 0
        %vm1421 = vcmp.eq.s32.totalorder %v1405, 1
        %vm1422 = vcmp.eq.s32.totalorder %v1406, 1
        %vm1423 = vcmp.eq.s32.totalorder %v1407, 1
        %vm1424 = vcmp.eq.s32.totalorder %v1408, 1
        %vm1425 = vcmp.eq.s32.totalorder %v1409, 1
        %vm1426 = vcmp.eq.s32.totalorder %v1410, 1
        %vm1427 = vcmp.eq.s32.totalorder %v1411, 1
        %vm1428 = vcmp.eq.s32.totalorder %v1412, 1
        %vm1429 = vcmp.eq.s32.totalorder %v1413, 1
        %vm1430 = vcmp.eq.s32.totalorder %v1414, 1
        %vm1431 = vcmp.eq.s32.totalorder %v1415, 1
        %vm1432 = vcmp.eq.s32.totalorder %v1416, 1
        %vm1433 = vcmp.eq.s32.totalorder %v1417, 1
        %vm1434 = vcmp.eq.s32.totalorder %v1418, 1
        %vm1435 = vcmp.eq.s32.totalorder %v1419, 1
        %vm1436 = vcmp.eq.s32.totalorder %v1420, 1
        %v1437 = vsel %vm1421, 0.0, %v1403
        %v1438 = vsel %vm1422, 0.0, %v1402
        %v1439 = vsel %vm1423, 0.0, %v1401
        %v1440 = vsel %vm1424, 0.0, %v1400
        %v1441 = vsel %vm1425, 0.0, %v1399
        %v1442 = vsel %vm1426, 0.0, %v1398
        %v1443 = vsel %vm1427, 0.0, %v1397
        %v1444 = vsel %vm1428, 0.0, %v1396
        %v1445 = vsel %vm1429, 0.0, %v1395
        %v1446 = vsel %vm1430, 0.0, %v1394
        %v1447 = vsel %vm1431, 0.0, %v1393
        %v1448 = vsel %vm1432, 0.0, %v1392
        %v1449 = vsel %vm1433, 0.0, %v1391
        %v1450 = vsel %vm1434, 0.0, %v1390
        %v1451 = vsel %vm1435, 0.0, %v1389
        %v1452 = vsel %vm1436, 0.0, %v1404
        %v1453 = vadd.f32 %v1340, %v877
        %v1454 = vadd.f32 %v1341, %v881
        %v1455 = vadd.f32 %v1342, %v887
        %v1456 = vadd.f32 %v1343, %v891
        %v1457 = vadd.f32 %v1344, %v897
        %v1458 = vadd.f32 %v1345, %v901
        %v1459 = vadd.f32 %v1346, %v907
        %v1460 = vadd.f32 %v1347, %v911
        %v1461 = vadd.f32 %v1348, %v917
        %v1462 = vadd.f32 %v1349, %v921
        %v1463 = vadd.f32 %v1350, %v927
        %v1464 = vadd.f32 %v1351, %v931
        %v1465 = vadd.f32 %v1352, %v937
        %v1466 = vadd.f32 %v1353, %v941
        %v1467 = vadd.f32 %v1354, %v947
        %v1468 = vadd.f32 %v1355, %v951
        %v1469 = vadd.f32 %v1453, %v1437
        %v1470 = vadd.f32 %v1454, %v1438
        %v1471 = vadd.f32 %v1455, %v1439
        %v1472 = vadd.f32 %v1456, %v1440
        %v1473 = vadd.f32 %v1457, %v1441
        %v1474 = vadd.f32 %v1458, %v1442
        %v1475 = vadd.f32 %v1459, %v1443
        %v1476 = vadd.f32 %v1460, %v1444
        %v1477 = vadd.f32 %v1461, %v1445
        %v1478 = vadd.f32 %v1462, %v1446
        %v1479 = vadd.f32 %v1463, %v1447
        %v1480 = vadd.f32 %v1464, %v1448
        %v1481 = vadd.f32 %v1465, %v1449
        %v1482 = vadd.f32 %v1466, %v1450
        %v1483 = vadd.f32 %v1467, %v1451
        %v1484 = vadd.f32 %v1468, %v1452
        %v1485 = vld [vmem:[%s3] sm:$0x1]
        %v1487 = vlaneseq
        %v1488 = vshrl.u32 %v1487, 7
        %v1489 = vsub.s32 0, %v1488
        %v1490 = vrot.slane %v1485, %v1489
        %v1492 = vadd.f32 %v1469, %v1490
        %v1493 = vadd.f32 %v1470, %v1490
        %v1494 = vadd.f32 %v1471, %v1490
        %v1495 = vadd.f32 %v1472, %v1490
        %v1496 = vadd.f32 %v1473, %v1490
        %v1497 = vadd.f32 %v1474, %v1490
        %v1498 = vadd.f32 %v1475, %v1490
        %v1499 = vadd.f32 %v1476, %v1490
        %v1500 = vadd.f32 %v1477, %v1490
        %v1501 = vadd.f32 %v1478, %v1490
        %v1502 = vadd.f32 %v1479, %v1490
        %v1503 = vadd.f32 %v1480, %v1490
        %v1504 = vadd.f32 %v1481, %v1490
        %v1505 = vadd.f32 %v1482, %v1490
        %v1506 = vadd.f32 %v1483, %v1490
        %v1507 = vadd.f32 %v1484, %v1490
        %v1508 = vmax.f32 %v1492, 0.0
        %v1509 = vmax.f32 %v1493, 0.0
        %v1510 = vmax.f32 %v1494, 0.0
        %v1511 = vmax.f32 %v1495, 0.0
        %v1512 = vmax.f32 %v1496, 0.0
        %v1513 = vmax.f32 %v1497, 0.0
        %v1514 = vmax.f32 %v1498, 0.0
        %v1515 = vmax.f32 %v1499, 0.0
        %v1516 = vmax.f32 %v1500, 0.0
        %v1517 = vmax.f32 %v1501, 0.0
        %v1518 = vmax.f32 %v1502, 0.0
        %v1519 = vmax.f32 %v1503, 0.0
        %v1520 = vmax.f32 %v1504, 0.0
        %v1521 = vmax.f32 %v1505, 0.0
        %v1522 = vmax.f32 %v1506, 0.0
        %v1523 = vmax.f32 %v1507, 0.0
        %v1524 = vrot.slane %v1508, 1
        %v1525 = vrot.slane %v1509, 1
        %v1526 = vrot.slane %v1510, 1
        %v1527 = vrot.slane %v1511, 1
        %v1528 = vrot.slane %v1512, 1
        %v1529 = vrot.slane %v1513, 1
        %v1530 = vrot.slane %v1514, 1
        %v1531 = vrot.slane %v1515, 1
        %v1532 = vrot.slane %v1516, 1
        %v1533 = vrot.slane %v1517, 1
        %v1534 = vrot.slane %v1518, 1
        %v1535 = vrot.slane %v1519, 1
        %v1536 = vrot.slane %v1520, 1
        %v1537 = vrot.slane %v1521, 1
        %v1538 = vrot.slane %v1522, 1
        %v1539 = vrot.slane %v1523, 1
        %v1540 = vsel %vm1388, %v1538, %v1539
        %v1541 = vsel %vm1388, %v1537, %v1538
        %v1542 = vsel %vm1388, %v1536, %v1537
        %v1543 = vsel %vm1388, %v1535, %v1536
        %v1544 = vsel %vm1388, %v1534, %v1535
        %v1545 = vsel %vm1388, %v1533, %v1534
        %v1546 = vsel %vm1388, %v1532, %v1533
        %v1547 = vsel %vm1388, %v1531, %v1532
        %v1548 = vsel %vm1388, %v1530, %v1531
        %v1549 = vsel %vm1388, %v1529, %v1530
        %v1550 = vsel %vm1388, %v1528, %v1529
        %v1551 = vsel %vm1388, %v1527, %v1528
        %v1552 = vsel %vm1388, %v1526, %v1527
        %v1553 = vsel %vm1388, %v1525, %v1526
        %v1554 = vsel %vm1388, %v1524, %v1525
        %v1555 = vsel %vm1388, %v1539, %v1524
        %v1556 = vmax.f32 %v1508, %v1554
        %v1557 = vmax.f32 %v1509, %v1553
        %v1558 = vmax.f32 %v1510, %v1552
        %v1559 = vmax.f32 %v1511, %v1551
        %v1560 = vmax.f32 %v1512, %v1550
        %v1561 = vmax.f32 %v1513, %v1549
        %v1562 = vmax.f32 %v1514, %v1548
        %v1563 = vmax.f32 %v1515, %v1547
        %v1564 = vmax.f32 %v1516, %v1546
        %v1565 = vmax.f32 %v1517, %v1545
        %v1566 = vmax.f32 %v1518, %v1544
        %v1567 = vmax.f32 %v1519, %v1543
        %v1568 = vmax.f32 %v1520, %v1542
        %v1569 = vmax.f32 %v1521, %v1541
        %v1570 = vmax.f32 %v1522, %v1540
        %v1571 = vmax.f32 %v1523, %v1555
        %1572 = vst [vmem:[#allocation2] sm:$0xff] %v1556
        %1573 = vst [vmem:[#allocation2 + $0x8] sm:$0xff] %v1557
        %1574 = vst [vmem:[#allocation2 + $0x10] sm:$0xff] %v1558
        %1575 = vst [vmem:[#allocation2 + $0x18] sm:$0xff] %v1559
        %1576 = vst [vmem:[#allocation2 + $0x20] sm:$0xff] %v1560
        %1577 = vst [vmem:[#allocation2 + $0x28] sm:$0xff] %v1561
        %1578 = vst [vmem:[#allocation2 + $0x30] sm:$0xff] %v1562
        %1579 = vst [vmem:[#allocation2 + $0x38] sm:$0xff] %v1563
        %1580 = vst [vmem:[#allocation2 + $0x40] sm:$0xff] %v1564
        %1581 = vst [vmem:[#allocation2 + $0x48] sm:$0xff] %v1565
        %1582 = vst [vmem:[#allocation2 + $0x50] sm:$0xff] %v1566
        %1583 = vst [vmem:[#allocation2 + $0x58] sm:$0xff] %v1567
        %1584 = vst [vmem:[#allocation2 + $0x60] sm:$0xff] %v1568
        %1585 = vst [vmem:[#allocation2 + $0x68] sm:$0xff] %v1569
        %1586 = vst [vmem:[#allocation2 + $0x70] sm:$0xff] %v1570
        %1587 = vst [vmem:[#allocation2 + $0x78] sm:$0xff] %v1571
        %v1588 = vld [vmem:[#allocation2] ss:$2 sm:$0xff]
        %s1589 = scalar_lea.vmem [#allocation2], 16
        %v1590 = vld [vmem:[%s1589] ss:$2 sm:$0xff]
        %s1591 = scalar_lea.vmem [#allocation2], 32
        %v1592 = vld [vmem:[%s1591] ss:$2 sm:$0xff]
        %s1593 = scalar_lea.vmem [#allocation2], 48
        %v1594 = vld [vmem:[%s1593] ss:$2 sm:$0xff]
        %s1595 = scalar_lea.vmem [#allocation2], 64
        %v1596 = vld [vmem:[%s1595] ss:$2 sm:$0xff]
        %s1597 = scalar_lea.vmem [#allocation2], 80
        %v1598 = vld [vmem:[%s1597] ss:$2 sm:$0xff]
        %s1599 = scalar_lea.vmem [#allocation2], 96
        %v1600 = vld [vmem:[%s1599] ss:$2 sm:$0xff]
        %s1601 = scalar_lea.vmem [#allocation2], 112
        %v1602 = vld [vmem:[%s1601] ss:$2 sm:$0xff]
        %v1603 = vpack.c.bf16 %v1590, %v1588
        %v1604 = vpack.c.bf16 %v1594, %v1592
        %v1605 = vpack.c.bf16 %v1598, %v1596
        %v1606 = vpack.c.bf16 %v1602, %v1600
        %v1607 = vld [vmem:[#allocation5] sm:$0xff]
        %v1608 = vld [vmem:[#allocation5 + $0x8] sm:$0xf]
        %v1609 = vld [vmem:[#allocation5 + $0xc] sm:$0xff]
        %v1610 = vld [vmem:[#allocation5 + $0x14] sm:$0xf]
        %v1611 = vld [vmem:[#allocation5 + $0x18] sm:$0xff]
        %v1612 = vld [vmem:[#allocation5 + $0x20] sm:$0xf]
        %v1613 = vld [vmem:[#allocation5 + $0x24] sm:$0xff]
        %v1614 = vld [vmem:[#allocation5 + $0x2c] sm:$0xf]
        %v1615 = vld [vmem:[#allocation5 + $0x30] sm:$0xff]
        %v1616 = vld [vmem:[#allocation5 + $0x38] sm:$0xf]
        %v1617 = vld [vmem:[#allocation5 + $0x3c] sm:$0xff]
        %v1618 = vld [vmem:[#allocation5 + $0x44] sm:$0xf]
        %v1619 = vld [vmem:[#allocation5 + $0x48] sm:$0xff]
        %v1620 = vld [vmem:[#allocation5 + $0x50] sm:$0xf]
        %v1621 = vld [vmem:[#allocation5 + $0x54] sm:$0xff]
        %v1622 = vld [vmem:[#allocation5 + $0x5c] sm:$0xf]
        %v1623 = vld [vmem:[#allocation5 + $0x60] sm:$0xff]
        %v1624 = vld [vmem:[#allocation5 + $0x68] sm:$0xf]
        %v1625 = vld [vmem:[#allocation5 + $0x6c] sm:$0xff]
        %v1626 = vld [vmem:[#allocation5 + $0x74] sm:$0xf]
        %v1627 = vld [vmem:[#allocation5 + $0x78] sm:$0xff]
        %v1628 = vld [vmem:[#allocation5 + $0x80] sm:$0xf]
        %v1629 = vld [vmem:[#allocation5 + $0x84] sm:$0xff]
        %v1630 = vld [vmem:[#allocation5 + $0x8c] sm:$0xf]
        %v1631 = vld [vmem:[#allocation5 + $0x90] sm:$0xff]
        %v1632 = vld [vmem:[#allocation5 + $0x98] sm:$0xf]
        %v1633 = vld [vmem:[#allocation5 + $0x9c] sm:$0xff]
        %v1634 = vld [vmem:[#allocation5 + $0xa4] sm:$0xf]
        %v1635 = vld [vmem:[#allocation5 + $0xa8] sm:$0xff]
        %v1636 = vld [vmem:[#allocation5 + $0xb0] sm:$0xf]
        %v1637 = vld [vmem:[#allocation5 + $0xb4] sm:$0xff]
        %v1638 = vld [vmem:[#allocation5 + $0xbc] sm:$0xf]
        %v1671 = vunpack.c.l.b16 %v1607
        %v1672 = vunpack.c.h.b16 %v1607
        %v1673 = vunpack.c.l.b16 %v1608
        %v1674 = vunpack.c.l.b16 %v1609
        %v1675 = vunpack.c.h.b16 %v1609
        %v1676 = vunpack.c.l.b16 %v1610
        %v1677 = vunpack.c.l.b16 %v1611
        %v1678 = vunpack.c.h.b16 %v1611
        %v1679 = vunpack.c.l.b16 %v1612
        %v1680 = vunpack.c.l.b16 %v1613
        %v1681 = vunpack.c.h.b16 %v1613
        %v1682 = vunpack.c.l.b16 %v1614
        %v1683 = vunpack.c.l.b16 %v1615
        %v1684 = vunpack.c.h.b16 %v1615
        %v1685 = vunpack.c.l.b16 %v1616
        %v1686 = vunpack.c.l.b16 %v1617
        %v1687 = vunpack.c.h.b16 %v1617
        %v1688 = vunpack.c.l.b16 %v1618
        %v1689 = vunpack.c.l.b16 %v1619
        %v1690 = vunpack.c.h.b16 %v1619
        %v1691 = vunpack.c.l.b16 %v1620
        %v1692 = vunpack.c.l.b16 %v1621
        %v1693 = vunpack.c.h.b16 %v1621
        %v1694 = vunpack.c.l.b16 %v1622
        %v1695 = vunpack.c.l.b16 %v1623
        %v1696 = vunpack.c.h.b16 %v1623
        %v1697 = vunpack.c.l.b16 %v1624
        %v1698 = vunpack.c.l.b16 %v1625
        %v1699 = vunpack.c.h.b16 %v1625
        %v1700 = vunpack.c.l.b16 %v1626
        %v1701 = vunpack.c.l.b16 %v1627
        %v1702 = vunpack.c.h.b16 %v1627
        %v1703 = vunpack.c.l.b16 %v1628
        %v1704 = vunpack.c.l.b16 %v1629
        %v1705 = vunpack.c.h.b16 %v1629
        %v1706 = vunpack.c.l.b16 %v1630
        %v1707 = vunpack.c.l.b16 %v1631
        %v1708 = vunpack.c.h.b16 %v1631
        %v1709 = vunpack.c.l.b16 %v1632
        %v1710 = vunpack.c.l.b16 %v1633
        %v1711 = vunpack.c.h.b16 %v1633
        %v1712 = vunpack.c.l.b16 %v1634
        %v1713 = vunpack.c.l.b16 %v1635
        %v1714 = vunpack.c.h.b16 %v1635
        %v1715 = vunpack.c.l.b16 %v1636
        %v1716 = vunpack.c.l.b16 %v1637
        %v1717 = vunpack.c.h.b16 %v1637
        %v1718 = vunpack.c.l.b16 %v1638
        %v1719 = vpack.c.b16 %v1674, %v1671
        %v1720 = vpack.c.b16 %v1675, %v1672
        %v1721 = vpack.c.b16 %v1676, %v1673
        %v1722 = vpack.c.b16 %v1680, %v1677
        %v1723 = vpack.c.b16 %v1681, %v1678
        %v1724 = vpack.c.b16 %v1682, %v1679
        %v1725 = vpack.c.b16 %v1686, %v1683
        %v1726 = vpack.c.b16 %v1687, %v1684
        %v1727 = vpack.c.b16 %v1688, %v1685
        %v1728 = vpack.c.b16 %v1692, %v1689
        %v1729 = vpack.c.b16 %v1693, %v1690
        %v1730 = vpack.c.b16 %v1694, %v1691
        %v1731 = vpack.c.b16 %v1698, %v1695
        %v1732 = vpack.c.b16 %v1699, %v1696
        %v1733 = vpack.c.b16 %v1700, %v1697
        %v1734 = vpack.c.b16 %v1704, %v1701
        %v1735 = vpack.c.b16 %v1705, %v1702
        %v1736 = vpack.c.b16 %v1706, %v1703
        %v1737 = vpack.c.b16 %v1710, %v1707
        %v1738 = vpack.c.b16 %v1711, %v1708
        %v1739 = vpack.c.b16 %v1712, %v1709
        %v1740 = vpack.c.b16 %v1716, %v1713
        %v1741 = vpack.c.b16 %v1717, %v1714
        %v1742 = vpack.c.b16 %v1718, %v1715
        %1767 = vmatprep.subr.bf16.mxu0 %v1720
        %1768 = vmatpush1.bf16.msra.mxu0 %v1719
        %1769 = vmatprep.subr.bf16.mxu0 %v1723
        %1770 = vmatpush1.bf16.msra.mxu0 %v1722
        %1771 = vmatprep.subr.bf16.mxu0 %v1726
        %1772 = vmatpush1.bf16.msra.mxu0 %v1725
        %1773 = vmatprep.subr.bf16.mxu0 %v1729
        %1774 = vmatpush1.bf16.msra.mxu0 %v1728
        %1775 = vmatprep.subr.bf16.mxu0 %v1732
        %1776 = vmatpush1.bf16.msra.mxu0 %v1731
        %1777 = vmatprep.subr.bf16.mxu0 %v1735
        %1778 = vmatpush1.bf16.msra.mxu0 %v1734
        %1779 = vmatprep.subr.bf16.mxu0 %v1738
        %1780 = vmatpush1.bf16.msra.mxu0 %v1737
        %1781 = vmatprep.subr.bf16.mxu0 %v1741
        %1782 = vmatpush1.bf16.msra.mxu0 %v1740
        %1783 = vmatprep.subr.bf16.mxu0 0
        %1784 = vmatpush1.bf16.msra.mxu0 0
        %1785 = vmatprep.subr.bf16.mxu0 0
        %1786 = vmatpush1.bf16.msra.mxu0 0
        %1787 = vmatprep.subr.bf16.mxu0 0
        %1788 = vmatpush1.bf16.msra.mxu0 0
        %1789 = vmatprep.subr.bf16.mxu0 0
        %1790 = vmatpush1.bf16.msra.mxu0 0
        %1791 = vmatprep.subr.bf16.mxu0 0
        %1792 = vmatpush1.bf16.msra.mxu0 0
        %1793 = vmatprep.subr.bf16.mxu0 0
        %1794 = vmatpush1.bf16.msra.mxu0 0
        %1795 = vmatprep.subr.bf16.mxu0 0
        %1796 = vmatpush1.bf16.msra.mxu0 0
        %1797 = vmatprep.subr.bf16.mxu0 0
        %1798 = vmatpush1.bf16.msra.mxu0 0
        %1799 = vmatprep.mubr.bf16.mxu0 0
        %1800 = vmatmul.mubr.bf16.gmra.mrb[0].mxu0 %v1603
        %v1801 = vpop.f32.mrb[0].mxu0
        %v1802 = vadd.f32 0.0, %v1801
        %v1803 = vpop.f32.mrb[0].mxu0
        %v1804 = vadd.f32 0.0, %v1803
        %v1805 = vpop.f32.mrb[0].mxu0
        %v1806 = vadd.f32 0.0, %v1805
        %v1807 = vpop.f32.mrb[0].mxu0
        %v1808 = vadd.f32 0.0, %v1807
        %1809 = vmatprep.mubr.bf16.mxu0 0
        %1810 = vmatmul.mubr.bf16.gmra.mrb[0].mxu0 %v1604
        %v1811 = vpop.f32.mrb[0].mxu0
        %v1812 = vadd.f32 0.0, %v1811
        %v1813 = vpop.f32.mrb[0].mxu0
        %v1814 = vadd.f32 0.0, %v1813
        %v1815 = vpop.f32.mrb[0].mxu0
        %v1816 = vadd.f32 0.0, %v1815
        %v1817 = vpop.f32.mrb[0].mxu0
        %v1818 = vadd.f32 0.0, %v1817
        %1819 = vmatprep.mubr.bf16.mxu0 0
        %1820 = vmatmul.mubr.bf16.gmra.mrb[0].mxu0 %v1605
        %v1821 = vpop.f32.mrb[0].mxu0
        %v1822 = vadd.f32 0.0, %v1821
        %v1823 = vpop.f32.mrb[0].mxu0
        %v1824 = vadd.f32 0.0, %v1823
        %v1825 = vpop.f32.mrb[0].mxu0
        %v1826 = vadd.f32 0.0, %v1825
        %v1827 = vpop.f32.mrb[0].mxu0
        %v1828 = vadd.f32 0.0, %v1827
        %1829 = vmatprep.mubr.bf16.mxu0 0
        %1830 = vmatmul.mubr.bf16.gmra.mrb[0].mxu0 %v1606
        %v1831 = vpop.f32.mrb[0].mxu0
        %v1832 = vadd.f32 0.0, %v1831
        %v1833 = vpop.f32.mrb[0].mxu0
        %v1834 = vadd.f32 0.0, %v1833
        %v1835 = vpop.f32.mrb[0].mxu0
        %v1836 = vadd.f32 0.0, %v1835
        %v1837 = vpop.f32.mrb[0].mxu0
        %v1838 = vadd.f32 0.0, %v1837
        %1839 = vdwg.mxu0
        %1840 = vmatprep.subr.bf16.mxu0 0
        %1841 = vmatpush1.bf16.msra.mxu0 %v1721
        %1842 = vmatprep.subr.bf16.mxu0 0
        %1843 = vmatpush1.bf16.msra.mxu0 %v1724
        %1844 = vmatprep.subr.bf16.mxu0 0
        %1845 = vmatpush1.bf16.msra.mxu0 %v1727
        %1846 = vmatprep.subr.bf16.mxu0 0
        %1847 = vmatpush1.bf16.msra.mxu0 %v1730
        %1848 = vmatprep.subr.bf16.mxu0 0
        %1849 = vmatpush1.bf16.msra.mxu0 %v1733
        %1850 = vmatprep.subr.bf16.mxu0 0
        %1851 = vmatpush1.bf16.msra.mxu0 %v1736
        %1852 = vmatprep.subr.bf16.mxu0 0
        %1853 = vmatpush1.bf16.msra.mxu0 %v1739
        %1854 = vmatprep.subr.bf16.mxu0 0
        %1855 = vmatpush1.bf16.msra.mxu0 %v1742
        %1856 = vmatprep.subr.bf16.mxu0 0
        %1857 = vmatpush1.bf16.msra.mxu0 0
        %1858 = vmatprep.subr.bf16.mxu0 0
        %1859 = vmatpush1.bf16.msra.mxu0 0
        %1860 = vmatprep.subr.bf16.mxu0 0
        %1861 = vmatpush1.bf16.msra.mxu0 0
        %1862 = vmatprep.subr.bf16.mxu0 0
        %1863 = vmatpush1.bf16.msra.mxu0 0
        %1864 = vmatprep.subr.bf16.mxu0 0
        %1865 = vmatpush1.bf16.msra.mxu0 0
        %1866 = vmatprep.subr.bf16.mxu0 0
        %1867 = vmatpush1.bf16.msra.mxu0 0
        %1868 = vmatprep.subr.bf16.mxu0 0
        %1869 = vmatpush1.bf16.msra.mxu0 0
        %1870 = vmatprep.subr.bf16.mxu0 0
        %1871 = vmatpush1.bf16.msra.mxu0 0
        %1872 = vmatprep.mubr.bf16.mxu0 0
        %1873 = vmatmul.mubr.bf16.gmra.mrb[0].mxu0 %v1603
        %v1874 = vpop.f32.mrb[0].mxu0
        %v1875 = vadd.f32 0.0, %v1874
        %v1876 = vpop.f32.mrb[0].mxu0
        %v1877 = vpop.f32.mrb[0].mxu0
        %v1878 = vadd.f32 0.0, %v1877
        %v1879 = vpop.f32.mrb[0].mxu0
        %1880 = vmatprep.mubr.bf16.mxu0 0
        %1881 = vmatmul.mubr.bf16.gmra.mrb[0].mxu0 %v1604
        %v1882 = vpop.f32.mrb[0].mxu0
        %v1883 = vadd.f32 0.0, %v1882
        %v1884 = vpop.f32.mrb[0].mxu0
        %v1885 = vpop.f32.mrb[0].mxu0
        %v1886 = vadd.f32 0.0, %v1885
        %v1887 = vpop.f32.mrb[0].mxu0
        %1888 = vmatprep.mubr.bf16.mxu0 0
        %1889 = vmatmul.mubr.bf16.gmra.mrb[0].mxu0 %v1605
        %v1890 = vpop.f32.mrb[0].mxu0
        %v1891 = vadd.f32 0.0, %v1890
        %v1892 = vpop.f32.mrb[0].mxu0
        %v1893 = vpop.f32.mrb[0].mxu0
        %v1894 = vadd.f32 0.0, %v1893
        %v1895 = vpop.f32.mrb[0].mxu0
        %1896 = vmatprep.mubr.bf16.mxu0 0
        %1897 = vmatmul.mubr.bf16.gmra.mrb[0].mxu0 %v1606
        %v1898 = vpop.f32.mrb[0].mxu0
        %v1899 = vadd.f32 0.0, %v1898
        %v1900 = vpop.f32.mrb[0].mxu0
        %v1901 = vpop.f32.mrb[0].mxu0
        %v1902 = vadd.f32 0.0, %v1901
        %v1903 = vpop.f32.mrb[0].mxu0
        %1904 = vdwg.mxu0
        %vm1905 = vcmp.lt.s32.totalorder %v1051, 0
        %v1906 = vsub.s32 0, %v1051
        %v1907 = vsel %vm1905, %v1906, %v1051
        %v1908 = vshrl.u32 %v1907, 3
        %v1909 = vand.u32 %v1907, 7
        %v1910 = vsub.s32 0, %v1909
        %v1911 = vsel %vm1905, %v1910, %v1909
        %vm1912 = vcmp.lt.s32.totalorder %v1052, 0
        %v1913 = vsub.s32 0, %v1052
        %v1914 = vsel %vm1912, %v1913, %v1052
        %v1915 = vshrl.u32 %v1914, 3
        %v1916 = vand.u32 %v1914, 7
        %v1917 = vsub.s32 0, %v1916
        %v1918 = vsel %vm1912, %v1917, %v1916
        %vm1919 = vcmp.lt.s32.totalorder %v1053, 0
        %v1920 = vsub.s32 0, %v1053
        %v1921 = vsel %vm1919, %v1920, %v1053
        %v1922 = vshrl.u32 %v1921, 3
        %v1923 = vand.u32 %v1921, 7
        %v1924 = vsub.s32 0, %v1923
        %v1925 = vsel %vm1919, %v1924, %v1923
        %vm1926 = vcmp.lt.s32.totalorder %v1054, 0
        %v1927 = vsub.s32 0, %v1054
        %v1928 = vsel %vm1926, %v1927, %v1054
        %v1929 = vshrl.u32 %v1928, 3
        %v1930 = vand.u32 %v1928, 7
        %v1931 = vsub.s32 0, %v1930
        %v1932 = vsel %vm1926, %v1931, %v1930
        %vm1933 = vcmp.lt.s32.totalorder %v1055, 0
        %v1934 = vsub.s32 0, %v1055
        %v1935 = vsel %vm1933, %v1934, %v1055
        %v1936 = vshrl.u32 %v1935, 3
        %v1937 = vand.u32 %v1935, 7
        %v1938 = vsub.s32 0, %v1937
        %v1939 = vsel %vm1933, %v1938, %v1937
        %vm1940 = vcmp.lt.s32.totalorder %v1056, 0
        %v1941 = vsub.s32 0, %v1056
        %v1942 = vsel %vm1940, %v1941, %v1056
        %v1943 = vshrl.u32 %v1942, 3
        %v1944 = vand.u32 %v1942, 7
        %v1945 = vsub.s32 0, %v1944
        %v1946 = vsel %vm1940, %v1945, %v1944
        %vm1947 = vcmp.lt.s32.totalorder %v1057, 0
        %v1948 = vsub.s32 0, %v1057
        %v1949 = vsel %vm1947, %v1948, %v1057
        %v1950 = vshrl.u32 %v1949, 3
        %v1951 = vand.u32 %v1949, 7
        %v1952 = vsub.s32 0, %v1951
        %v1953 = vsel %vm1947, %v1952, %v1951
        %vm1954 = vcmp.lt.s32.totalorder %v1058, 0
        %v1955 = vsub.s32 0, %v1058
        %v1956 = vsel %vm1954, %v1955, %v1058
        %v1957 = vshrl.u32 %v1956, 3
        %v1958 = vand.u32 %v1956, 7
        %v1959 = vsub.s32 0, %v1958
        %v1960 = vsel %vm1954, %v1959, %v1958
        %vm1961 = vcmp.ne.s32.totalorder %v1911, 0
        %vm1962 = vcmp.ne.s32.totalorder %v1918, 0
        %vm1963 = vcmp.ne.s32.totalorder %v1925, 0
        %vm1964 = vcmp.ne.s32.totalorder %v1932, 0
        %vm1965 = vcmp.ne.s32.totalorder %v1939, 0
        %vm1966 = vcmp.ne.s32.totalorder %v1946, 0
        %vm1967 = vcmp.ne.s32.totalorder %v1953, 0
        %vm1968 = vcmp.ne.s32.totalorder %v1960, 0
        %vm1969 = vcmp.lt.s32.totalorder %v1911, 0
        %vm1970 = vcmp.lt.s32.totalorder %v1918, 0
        %vm1971 = vcmp.lt.s32.totalorder %v1925, 0
        %vm1972 = vcmp.lt.s32.totalorder %v1932, 0
        %vm1973 = vcmp.lt.s32.totalorder %v1939, 0
        %vm1974 = vcmp.lt.s32.totalorder %v1946, 0
        %vm1975 = vcmp.lt.s32.totalorder %v1953, 0
        %vm1976 = vcmp.lt.s32.totalorder %v1960, 0
        %vm1977 = vmand %vm1969, %vm1961
        %vm1978 = vmand %vm1970, %vm1962
        %vm1979 = vmand %vm1971, %vm1963
        %vm1980 = vmand %vm1972, %vm1964
        %vm1981 = vmand %vm1973, %vm1965
        %vm1982 = vmand %vm1974, %vm1966
        %vm1983 = vmand %vm1975, %vm1967
        %vm1984 = vmand %vm1976, %vm1968
        %v1985 = vadd.s32 %v1911, 8
        %v1986 = vadd.s32 %v1918, 8
        %v1987 = vadd.s32 %v1925, 8
        %v1988 = vadd.s32 %v1932, 8
        %v1989 = vadd.s32 %v1939, 8
        %v1990 = vadd.s32 %v1946, 8
        %v1991 = vadd.s32 %v1953, 8
        %v1992 = vadd.s32 %v1960, 8
        %v1993 = vsel %vm1977, %v1985, %v1911
        %v1994 = vsel %vm1978, %v1986, %v1918
        %v1995 = vsel %vm1979, %v1987, %v1925
        %v1996 = vsel %vm1980, %v1988, %v1932
        %v1997 = vsel %vm1981, %v1989, %v1939
        %v1998 = vsel %vm1982, %v1990, %v1946
        %v1999 = vsel %vm1983, %v1991, %v1953
        %v2000 = vsel %vm1984, %v1992, %v1960
        %vm2001 = vcmp.eq.s32.totalorder %v1993, 0
        %vm2002 = vcmp.eq.s32.totalorder %v1994, 0
        %vm2003 = vcmp.eq.s32.totalorder %v1995, 0
        %vm2004 = vcmp.eq.s32.totalorder %v1996, 0
        %vm2005 = vcmp.eq.s32.totalorder %v1997, 0
        %vm2006 = vcmp.eq.s32.totalorder %v1998, 0
        %vm2007 = vcmp.eq.s32.totalorder %v1999, 0
        %vm2008 = vcmp.eq.s32.totalorder %v2000, 0
        %v2009 = vrot.slane %v1802, 7
        %v2010 = vrot.slane %v1806, 7
        %v2011 = vrot.slane %v1812, 7
        %v2012 = vrot.slane %v1816, 7
        %v2013 = vrot.slane %v1822, 7
        %v2014 = vrot.slane %v1826, 7
        %v2015 = vrot.slane %v1832, 7
        %v2016 = vrot.slane %v1836, 7
        %v2017 = vsel %vm1291, %v2015, %v2016
        %v2018 = vsel %vm1291, %v2014, %v2015
        %v2019 = vsel %vm1291, %v2013, %v2014
        %v2020 = vsel %vm1291, %v2012, %v2013
        %v2021 = vsel %vm1291, %v2011, %v2012
        %v2022 = vsel %vm1291, %v2010, %v2011
        %v2023 = vsel %vm1291, %v2009, %v2010
        %v2024 = vsel %vm1291, %v2016, %v2009
        %v2025 = vsel %vm2001, 1, 0
        %v2026 = vsel %vm2002, 1, 0
        %v2027 = vsel %vm2003, 1, 0
        %v2028 = vsel %vm2004, 1, 0
        %v2029 = vsel %vm2005, 1, 0
        %v2030 = vsel %vm2006, 1, 0
        %v2031 = vsel %vm2007, 1, 0
        %v2032 = vsel %vm2008, 1, 0
        %vm2033 = vcmp.eq.s32.totalorder %v2025, 1
        %vm2034 = vcmp.eq.s32.totalorder %v2026, 1
        %vm2035 = vcmp.eq.s32.totalorder %v2027, 1
        %vm2036 = vcmp.eq.s32.totalorder %v2028, 1
        %vm2037 = vcmp.eq.s32.totalorder %v2029, 1
        %vm2038 = vcmp.eq.s32.totalorder %v2030, 1
        %vm2039 = vcmp.eq.s32.totalorder %v2031, 1
        %vm2040 = vcmp.eq.s32.totalorder %v2032, 1
        %v2041 = vsel %vm2033, 0.0, %v2024
        %v2042 = vsel %vm2034, 0.0, %v2023
        %v2043 = vsel %vm2035, 0.0, %v2022
        %v2044 = vsel %vm2036, 0.0, %v2021
        %v2045 = vsel %vm2037, 0.0, %v2020
        %v2046 = vsel %vm2038, 0.0, %v2019
        %v2047 = vsel %vm2039, 0.0, %v2018
        %v2048 = vsel %vm2040, 0.0, %v2017
        %vm2049 = vcmp.eq.s32.totalorder %v1993, 7
        %vm2050 = vcmp.eq.s32.totalorder %v1994, 7
        %vm2051 = vcmp.eq.s32.totalorder %v1995, 7
        %vm2052 = vcmp.eq.s32.totalorder %v1996, 7
        %vm2053 = vcmp.eq.s32.totalorder %v1997, 7
        %vm2054 = vcmp.eq.s32.totalorder %v1998, 7
        %vm2055 = vcmp.eq.s32.totalorder %v1999, 7
        %vm2056 = vcmp.eq.s32.totalorder %v2000, 7
        %v2057 = vrot.slane %v1875, 1
        %v2058 = vrot.slane %v1878, 1
        %v2059 = vrot.slane %v1883, 1
        %v2060 = vrot.slane %v1886, 1
        %v2061 = vrot.slane %v1891, 1
        %v2062 = vrot.slane %v1894, 1
        %v2063 = vrot.slane %v1899, 1
        %v2064 = vrot.slane %v1902, 1
        %v2065 = vsel %vm1388, %v2063, %v2064
        %v2066 = vsel %vm1388, %v2062, %v2063
        %v2067 = vsel %vm1388, %v2061, %v2062
        %v2068 = vsel %vm1388, %v2060, %v2061
        %v2069 = vsel %vm1388, %v2059, %v2060
        %v2070 = vsel %vm1388, %v2058, %v2059
        %v2071 = vsel %vm1388, %v2057, %v2058
        %v2072 = vsel %vm1388, %v2064, %v2057
        %v2073 = vsel %vm2049, 1, 0
        %v2074 = vsel %vm2050, 1, 0
        %v2075 = vsel %vm2051, 1, 0
        %v2076 = vsel %vm2052, 1, 0
        %v2077 = vsel %vm2053, 1, 0
        %v2078 = vsel %vm2054, 1, 0
        %v2079 = vsel %vm2055, 1, 0
        %v2080 = vsel %vm2056, 1, 0
        %vm2081 = vcmp.eq.s32.totalorder %v2073, 1
        %vm2082 = vcmp.eq.s32.totalorder %v2074, 1
        %vm2083 = vcmp.eq.s32.totalorder %v2075, 1
        %vm2084 = vcmp.eq.s32.totalorder %v2076, 1
        %vm2085 = vcmp.eq.s32.totalorder %v2077, 1
        %vm2086 = vcmp.eq.s32.totalorder %v2078, 1
        %vm2087 = vcmp.eq.s32.totalorder %v2079, 1
        %vm2088 = vcmp.eq.s32.totalorder %v2080, 1
        %v2089 = vsel %vm2081, 0.0, %v2071
        %v2090 = vsel %vm2082, 0.0, %v2070
        %v2091 = vsel %vm2083, 0.0, %v2069
        %v2092 = vsel %vm2084, 0.0, %v2068
        %v2093 = vsel %vm2085, 0.0, %v2067
        %v2094 = vsel %vm2086, 0.0, %v2066
        %v2095 = vsel %vm2087, 0.0, %v2065
        %v2096 = vsel %vm2088, 0.0, %v2072
        %v2097 = vadd.f32 %v2041, %v1804
        %v2098 = vadd.f32 %v2042, %v1808
        %v2099 = vadd.f32 %v2043, %v1814
        %v2100 = vadd.f32 %v2044, %v1818
        %v2101 = vadd.f32 %v2045, %v1824
        %v2102 = vadd.f32 %v2046, %v1828
        %v2103 = vadd.f32 %v2047, %v1834
        %v2104 = vadd.f32 %v2048, %v1838
        %v2105 = vadd.f32 %v2097, %v2089
        %v2106 = vadd.f32 %v2098, %v2090
        %v2107 = vadd.f32 %v2099, %v2091
        %v2108 = vadd.f32 %v2100, %v2092
        %v2109 = vadd.f32 %v2101, %v2093
        %v2110 = vadd.f32 %v2102, %v2094
        %v2111 = vadd.f32 %v2103, %v2095
        %v2112 = vadd.f32 %v2104, %v2096
        %v2113 = vld [vmem:[%s5] sm:$0x1]
        %v2115 = vlaneseq
        %v2116 = vshrl.u32 %v2115, 7
        %v2117 = vsub.s32 0, %v2116
        %v2118 = vrot.slane %v2113, %v2117
        %v2120 = vadd.f32 %v2105, %v2118
        %v2121 = vadd.f32 %v2106, %v2118
        %v2122 = vadd.f32 %v2107, %v2118
        %v2123 = vadd.f32 %v2108, %v2118
        %v2124 = vadd.f32 %v2109, %v2118
        %v2125 = vadd.f32 %v2110, %v2118
        %v2126 = vadd.f32 %v2111, %v2118
        %v2127 = vadd.f32 %v2112, %v2118
        %v2128 = vmax.f32 %v2120, 0.0
        %v2129 = vmax.f32 %v2121, 0.0
        %v2130 = vmax.f32 %v2122, 0.0
        %v2131 = vmax.f32 %v2123, 0.0
        %v2132 = vmax.f32 %v2124, 0.0
        %v2133 = vmax.f32 %v2125, 0.0
        %v2134 = vmax.f32 %v2126, 0.0
        %v2135 = vmax.f32 %v2127, 0.0
        %v2136 = vrot.slane %v2128, 1
        %v2137 = vrot.slane %v2129, 1
        %v2138 = vrot.slane %v2130, 1
        %v2139 = vrot.slane %v2131, 1
        %v2140 = vrot.slane %v2132, 1
        %v2141 = vrot.slane %v2133, 1
        %v2142 = vrot.slane %v2134, 1
        %v2143 = vrot.slane %v2135, 1
        %v2144 = vsel %vm1388, %v2142, %v2143
        %v2145 = vsel %vm1388, %v2141, %v2142
        %v2146 = vsel %vm1388, %v2140, %v2141
        %v2147 = vsel %vm1388, %v2139, %v2140
        %v2148 = vsel %vm1388, %v2138, %v2139
        %v2149 = vsel %vm1388, %v2137, %v2138
        %v2150 = vsel %vm1388, %v2136, %v2137
        %v2151 = vsel %vm1388, %v2143, %v2136
        %v2152 = vmax.f32 %v2128, %v2150
        %v2153 = vmax.f32 %v2129, %v2149
        %v2154 = vmax.f32 %v2130, %v2148
        %v2155 = vmax.f32 %v2131, %v2147
        %v2156 = vmax.f32 %v2132, %v2146
        %v2157 = vmax.f32 %v2133, %v2145
        %v2158 = vmax.f32 %v2134, %v2144
        %v2159 = vmax.f32 %v2135, %v2151
        %2160 = vst [vmem:[#allocation3] sm:$0xff] %v2152
        %2161 = vst [vmem:[#allocation3 + $0x8] sm:$0xff] %v2153
        %2162 = vst [vmem:[#allocation3 + $0x10] sm:$0xff] %v2154
        %2163 = vst [vmem:[#allocation3 + $0x18] sm:$0xff] %v2155
        %2164 = vst [vmem:[#allocation3 + $0x20] sm:$0xff] %v2156
        %2165 = vst [vmem:[#allocation3 + $0x28] sm:$0xff] %v2157
        %2166 = vst [vmem:[#allocation3 + $0x30] sm:$0xff] %v2158
        %2167 = vst [vmem:[#allocation3 + $0x38] sm:$0xff] %v2159
        %v2168 = vld [vmem:[#allocation3] ss:$2 sm:$0xff]
        %s2169 = scalar_lea.vmem [#allocation3], 16
        %v2170 = vld [vmem:[%s2169] ss:$2 sm:$0xff]
        %s2171 = scalar_lea.vmem [#allocation3], 32
        %v2172 = vld [vmem:[%s2171] ss:$2 sm:$0xff]
        %s2173 = scalar_lea.vmem [#allocation3], 48
        %v2174 = vld [vmem:[%s2173] ss:$2 sm:$0xff]
        %v2175 = vpack.c.bf16 %v2170, %v2168
        %v2176 = vpack.c.bf16 %v2174, %v2172
        %v2177 = vld [vmem:[#allocation8] sm:$0xff]
        %v2178 = vld [vmem:[#allocation8 + $0x8] sm:$0xf]
        %v2179 = vld [vmem:[#allocation8 + $0xc] sm:$0xff]
        %v2180 = vld [vmem:[#allocation8 + $0x14] sm:$0xf]
        %v2181 = vld [vmem:[#allocation8 + $0x18] sm:$0xff]
        %v2182 = vld [vmem:[#allocation8 + $0x20] sm:$0xf]
        %v2183 = vld [vmem:[#allocation8 + $0x24] sm:$0xff]
        %v2184 = vld [vmem:[#allocation8 + $0x2c] sm:$0xf]
        %v2185 = vld [vmem:[#allocation8 + $0x30] sm:$0xff]
        %v2186 = vld [vmem:[#allocation8 + $0x38] sm:$0xf]
        %v2187 = vld [vmem:[#allocation8 + $0x3c] sm:$0xff]
        %v2188 = vld [vmem:[#allocation8 + $0x44] sm:$0xf]
        %v2189 = vld [vmem:[#allocation8 + $0x48] sm:$0xff]
        %v2190 = vld [vmem:[#allocation8 + $0x50] sm:$0xf]
        %v2191 = vld [vmem:[#allocation8 + $0x54] sm:$0xff]
        %v2192 = vld [vmem:[#allocation8 + $0x5c] sm:$0xf]
        %v2193 = vld [vmem:[#allocation8 + $0x60] sm:$0xff]
        %v2194 = vld [vmem:[#allocation8 + $0x68] sm:$0xf]
        %v2195 = vld [vmem:[#allocation8 + $0x6c] sm:$0xff]
        %v2196 = vld [vmem:[#allocation8 + $0x74] sm:$0xf]
        %v2197 = vld [vmem:[#allocation8 + $0x78] sm:$0xff]
        %v2198 = vld [vmem:[#allocation8 + $0x80] sm:$0xf]
        %v2199 = vld [vmem:[#allocation8 + $0x84] sm:$0xff]
        %v2200 = vld [vmem:[#allocation8 + $0x8c] sm:$0xf]
        %v2201 = vld [vmem:[#allocation8 + $0x90] sm:$0xff]
        %v2202 = vld [vmem:[#allocation8 + $0x98] sm:$0xf]
        %v2203 = vld [vmem:[#allocation8 + $0x9c] sm:$0xff]
        %v2204 = vld [vmem:[#allocation8 + $0xa4] sm:$0xf]
        %v2205 = vld [vmem:[#allocation8 + $0xa8] sm:$0xff]
        %v2206 = vld [vmem:[#allocation8 + $0xb0] sm:$0xf]
        %v2207 = vld [vmem:[#allocation8 + $0xb4] sm:$0xff]
        %v2208 = vld [vmem:[#allocation8 + $0xbc] sm:$0xf]
        %v2241 = vunpack.c.l.b16 %v2177
        %v2242 = vunpack.c.h.b16 %v2177
        %v2243 = vunpack.c.l.b16 %v2178
        %v2244 = vunpack.c.l.b16 %v2179
        %v2245 = vunpack.c.h.b16 %v2179
        %v2246 = vunpack.c.l.b16 %v2180
        %v2247 = vunpack.c.l.b16 %v2181
        %v2248 = vunpack.c.h.b16 %v2181
        %v2249 = vunpack.c.l.b16 %v2182
        %v2250 = vunpack.c.l.b16 %v2183
        %v2251 = vunpack.c.h.b16 %v2183
        %v2252 = vunpack.c.l.b16 %v2184
        %v2253 = vunpack.c.l.b16 %v2185
        %v2254 = vunpack.c.h.b16 %v2185
        %v2255 = vunpack.c.l.b16 %v2186
        %v2256 = vunpack.c.l.b16 %v2187
        %v2257 = vunpack.c.h.b16 %v2187
        %v2258 = vunpack.c.l.b16 %v2188
        %v2259 = vunpack.c.l.b16 %v2189
        %v2260 = vunpack.c.h.b16 %v2189
        %v2261 = vunpack.c.l.b16 %v2190
        %v2262 = vunpack.c.l.b16 %v2191
        %v2263 = vunpack.c.h.b16 %v2191
        %v2264 = vunpack.c.l.b16 %v2192
        %v2265 = vunpack.c.l.b16 %v2193
        %v2266 = vunpack.c.h.b16 %v2193
        %v2267 = vunpack.c.l.b16 %v2194
        %v2268 = vunpack.c.l.b16 %v2195
        %v2269 = vunpack.c.h.b16 %v2195
        %v2270 = vunpack.c.l.b16 %v2196
        %v2271 = vunpack.c.l.b16 %v2197
        %v2272 = vunpack.c.h.b16 %v2197
        %v2273 = vunpack.c.l.b16 %v2198
        %v2274 = vunpack.c.l.b16 %v2199
        %v2275 = vunpack.c.h.b16 %v2199
        %v2276 = vunpack.c.l.b16 %v2200
        %v2277 = vunpack.c.l.b16 %v2201
        %v2278 = vunpack.c.h.b16 %v2201
        %v2279 = vunpack.c.l.b16 %v2202
        %v2280 = vunpack.c.l.b16 %v2203
        %v2281 = vunpack.c.h.b16 %v2203
        %v2282 = vunpack.c.l.b16 %v2204
        %v2283 = vunpack.c.l.b16 %v2205
        %v2284 = vunpack.c.h.b16 %v2205
        %v2285 = vunpack.c.l.b16 %v2206
        %v2286 = vunpack.c.l.b16 %v2207
        %v2287 = vunpack.c.h.b16 %v2207
        %v2288 = vunpack.c.l.b16 %v2208
        %v2289 = vpack.c.b16 %v2244, %v2241
        %v2290 = vpack.c.b16 %v2245, %v2242
        %v2291 = vpack.c.b16 %v2246, %v2243
        %v2292 = vpack.c.b16 %v2250, %v2247
        %v2293 = vpack.c.b16 %v2251, %v2248
        %v2294 = vpack.c.b16 %v2252, %v2249
        %v2295 = vpack.c.b16 %v2256, %v2253
        %v2296 = vpack.c.b16 %v2257, %v2254
        %v2297 = vpack.c.b16 %v2258, %v2255
        %v2298 = vpack.c.b16 %v2262, %v2259
        %v2299 = vpack.c.b16 %v2263, %v2260
        %v2300 = vpack.c.b16 %v2264, %v2261
        %v2301 = vpack.c.b16 %v2268, %v2265
        %v2302 = vpack.c.b16 %v2269, %v2266
        %v2303 = vpack.c.b16 %v2270, %v2267
        %v2304 = vpack.c.b16 %v2274, %v2271
        %v2305 = vpack.c.b16 %v2275, %v2272
        %v2306 = vpack.c.b16 %v2276, %v2273
        %v2307 = vpack.c.b16 %v2280, %v2277
        %v2308 = vpack.c.b16 %v2281, %v2278
        %v2309 = vpack.c.b16 %v2282, %v2279
        %v2310 = vpack.c.b16 %v2286, %v2283
        %v2311 = vpack.c.b16 %v2287, %v2284
        %v2312 = vpack.c.b16 %v2288, %v2285
        %2337 = vmatprep.subr.bf16.mxu0 %v2290
        %2338 = vmatpush1.bf16.msra.mxu0 %v2289
        %2339 = vmatprep.subr.bf16.mxu0 %v2293
        %2340 = vmatpush1.bf16.msra.mxu0 %v2292
        %2341 = vmatprep.subr.bf16.mxu0 %v2296
        %2342 = vmatpush1.bf16.msra.mxu0 %v2295
        %2343 = vmatprep.subr.bf16.mxu0 %v2299
        %2344 = vmatpush1.bf16.msra.mxu0 %v2298
        %2345 = vmatprep.subr.bf16.mxu0 %v2302
        %2346 = vmatpush1.bf16.msra.mxu0 %v2301
        %2347 = vmatprep.subr.bf16.mxu0 %v2305
        %2348 = vmatpush1.bf16.msra.mxu0 %v2304
        %2349 = vmatprep.subr.bf16.mxu0 %v2308
        %2350 = vmatpush1.bf16.msra.mxu0 %v2307
        %2351 = vmatprep.subr.bf16.mxu0 %v2311
        %2352 = vmatpush1.bf16.msra.mxu0 %v2310
        %2353 = vmatprep.subr.bf16.mxu0 0
        %2354 = vmatpush1.bf16.msra.mxu0 0
        %2355 = vmatprep.subr.bf16.mxu0 0
        %2356 = vmatpush1.bf16.msra.mxu0 0
        %2357 = vmatprep.subr.bf16.mxu0 0
        %2358 = vmatpush1.bf16.msra.mxu0 0
        %2359 = vmatprep.subr.bf16.mxu0 0
        %2360 = vmatpush1.bf16.msra.mxu0 0
        %2361 = vmatprep.subr.bf16.mxu0 0
        %2362 = vmatpush1.bf16.msra.mxu0 0
        %2363 = vmatprep.subr.bf16.mxu0 0
        %2364 = vmatpush1.bf16.msra.mxu0 0
        %2365 = vmatprep.subr.bf16.mxu0 0
        %2366 = vmatpush1.bf16.msra.mxu0 0
        %2367 = vmatprep.subr.bf16.mxu0 0
        %2368 = vmatpush1.bf16.msra.mxu0 0
        %2369 = vmatprep.mubr.bf16.mxu0 0
        %2370 = vmatmul.mubr.bf16.gmra.mrb[0].mxu0 %v2175
        %v2371 = vpop.f32.mrb[0].mxu0
        %v2372 = vadd.f32 0.0, %v2371
        %v2373 = vpop.f32.mrb[0].mxu0
        %v2374 = vadd.f32 0.0, %v2373
        %v2375 = vpop.f32.mrb[0].mxu0
        %v2376 = vadd.f32 0.0, %v2375
        %v2377 = vpop.f32.mrb[0].mxu0
        %v2378 = vadd.f32 0.0, %v2377
        %2379 = vmatprep.mubr.bf16.mxu0 0
        %2380 = vmatmul.mubr.bf16.gmra.mrb[0].mxu0 %v2176
        %v2381 = vpop.f32.mrb[0].mxu0
        %v2382 = vadd.f32 0.0, %v2381
        %v2383 = vpop.f32.mrb[0].mxu0
        %v2384 = vadd.f32 0.0, %v2383
        %v2385 = vpop.f32.mrb[0].mxu0
        %v2386 = vadd.f32 0.0, %v2385
        %v2387 = vpop.f32.mrb[0].mxu0
        %v2388 = vadd.f32 0.0, %v2387
        %2389 = vdwg.mxu0
        %2390 = vmatprep.subr.bf16.mxu0 0
        %2391 = vmatpush1.bf16.msra.mxu0 %v2291
        %2392 = vmatprep.subr.bf16.mxu0 0
        %2393 = vmatpush1.bf16.msra.mxu0 %v2294
        %2394 = vmatprep.subr.bf16.mxu0 0
        %2395 = vmatpush1.bf16.msra.mxu0 %v2297
        %2396 = vmatprep.subr.bf16.mxu0 0
        %2397 = vmatpush1.bf16.msra.mxu0 %v2300
        %2398 = vmatprep.subr.bf16.mxu0 0
        %2399 = vmatpush1.bf16.msra.mxu0 %v2303
        %2400 = vmatprep.subr.bf16.mxu0 0
        %2401 = vmatpush1.bf16.msra.mxu0 %v2306
        %2402 = vmatprep.subr.bf16.mxu0 0
        %2403 = vmatpush1.bf16.msra.mxu0 %v2309
        %2404 = vmatprep.subr.bf16.mxu0 0
        %2405 = vmatpush1.bf16.msra.mxu0 %v2312
        %2406 = vmatprep.subr.bf16.mxu0 0
        %2407 = vmatpush1.bf16.msra.mxu0 0
        %2408 = vmatprep.subr.bf16.mxu0 0
        %2409 = vmatpush1.bf16.msra.mxu0 0
        %2410 = vmatprep.subr.bf16.mxu0 0
        %2411 = vmatpush1.bf16.msra.mxu0 0
        %2412 = vmatprep.subr.bf16.mxu0 0
        %2413 = vmatpush1.bf16.msra.mxu0 0
        %2414 = vmatprep.subr.bf16.mxu0 0
        %2415 = vmatpush1.bf16.msra.mxu0 0
        %2416 = vmatprep.subr.bf16.mxu0 0
        %2417 = vmatpush1.bf16.msra.mxu0 0
        %2418 = vmatprep.subr.bf16.mxu0 0
        %2419 = vmatpush1.bf16.msra.mxu0 0
        %2420 = vmatprep.subr.bf16.mxu0 0
        %2421 = vmatpush1.bf16.msra.mxu0 0
        %2422 = vmatprep.mubr.bf16.mxu0 0
        %2423 = vmatmul.mubr.bf16.gmra.mrb[0].mxu0 %v2175
        %v2424 = vpop.f32.mrb[0].mxu0
        %v2425 = vadd.f32 0.0, %v2424
        %v2426 = vpop.f32.mrb[0].mxu0
        %v2427 = vpop.f32.mrb[0].mxu0
        %v2428 = vadd.f32 0.0, %v2427
        %v2429 = vpop.f32.mrb[0].mxu0
        %2430 = vmatprep.mubr.bf16.mxu0 0
        %2431 = vmatmul.mubr.bf16.gmra.mrb[0].mxu0 %v2176
        %v2432 = vpop.f32.mrb[0].mxu0
        %v2433 = vadd.f32 0.0, %v2432
        %v2434 = vpop.f32.mrb[0].mxu0
        %v2435 = vpop.f32.mrb[0].mxu0
        %v2436 = vadd.f32 0.0, %v2435
        %v2437 = vpop.f32.mrb[0].mxu0
        %2438 = vdwg.mxu0
        %vm2439 = vcmp.lt.s32.totalorder %v1051, 0
        %v2440 = vsub.s32 0, %v1051
        %v2441 = vsel %vm2439, %v2440, %v1051
        %v2442 = vshrl.u32 %v2441, 2
        %v2443 = vand.u32 %v2441, 3
        %v2444 = vsub.s32 0, %v2443
        %v2445 = vsel %vm2439, %v2444, %v2443
        %vm2446 = vcmp.lt.s32.totalorder %v1052, 0
        %v2447 = vsub.s32 0, %v1052
        %v2448 = vsel %vm2446, %v2447, %v1052
        %v2449 = vshrl.u32 %v2448, 2
        %v2450 = vand.u32 %v2448, 3
        %v2451 = vsub.s32 0, %v2450
        %v2452 = vsel %vm2446, %v2451, %v2450
        %vm2453 = vcmp.lt.s32.totalorder %v1053, 0
        %v2454 = vsub.s32 0, %v1053
        %v2455 = vsel %vm2453, %v2454, %v1053
        %v2456 = vshrl.u32 %v2455, 2
        %v2457 = vand.u32 %v2455, 3
        %v2458 = vsub.s32 0, %v2457
        %v2459 = vsel %vm2453, %v2458, %v2457
        %vm2460 = vcmp.lt.s32.totalorder %v1054, 0
        %v2461 = vsub.s32 0, %v1054
        %v2462 = vsel %vm2460, %v2461, %v1054
        %v2463 = vshrl.u32 %v2462, 2
        %v2464 = vand.u32 %v2462, 3
        %v2465 = vsub.s32 0, %v2464
        %v2466 = vsel %vm2460, %v2465, %v2464
        %vm2467 = vcmp.ne.s32.totalorder %v2445, 0
        %vm2468 = vcmp.ne.s32.totalorder %v2452, 0
        %vm2469 = vcmp.ne.s32.totalorder %v2459, 0
        %vm2470 = vcmp.ne.s32.totalorder %v2466, 0
        %vm2471 = vcmp.lt.s32.totalorder %v2445, 0
        %vm2472 = vcmp.lt.s32.totalorder %v2452, 0
        %vm2473 = vcmp.lt.s32.totalorder %v2459, 0
        %vm2474 = vcmp.lt.s32.totalorder %v2466, 0
        %vm2475 = vmand %vm2471, %vm2467
        %vm2476 = vmand %vm2472, %vm2468
        %vm2477 = vmand %vm2473, %vm2469
        %vm2478 = vmand %vm2474, %vm2470
        %v2479 = vadd.s32 %v2445, 4
        %v2480 = vadd.s32 %v2452, 4
        %v2481 = vadd.s32 %v2459, 4
        %v2482 = vadd.s32 %v2466, 4
        %v2483 = vsel %vm2475, %v2479, %v2445
        %v2484 = vsel %vm2476, %v2480, %v2452
        %v2485 = vsel %vm2477, %v2481, %v2459
        %v2486 = vsel %vm2478, %v2482, %v2466
        %vm2487 = vcmp.eq.s32.totalorder %v2483, 0
        %vm2488 = vcmp.eq.s32.totalorder %v2484, 0
        %vm2489 = vcmp.eq.s32.totalorder %v2485, 0
        %vm2490 = vcmp.eq.s32.totalorder %v2486, 0
        %v2491 = vrot.slane %v2372, 7
        %v2492 = vrot.slane %v2376, 7
        %v2493 = vrot.slane %v2382, 7
        %v2494 = vrot.slane %v2386, 7
        %v2495 = vsel %vm1291, %v2493, %v2494
        %v2496 = vsel %vm1291, %v2492, %v2493
        %v2497 = vsel %vm1291, %v2491, %v2492
        %v2498 = vsel %vm1291, %v2494, %v2491
        %v2499 = vsel %vm2487, 1, 0
        %v2500 = vsel %vm2488, 1, 0
        %v2501 = vsel %vm2489, 1, 0
        %v2502 = vsel %vm2490, 1, 0
        %vm2503 = vcmp.eq.s32.totalorder %v2499, 1
        %vm2504 = vcmp.eq.s32.totalorder %v2500, 1
        %vm2505 = vcmp.eq.s32.totalorder %v2501, 1
        %vm2506 = vcmp.eq.s32.totalorder %v2502, 1
        %v2507 = vsel %vm2503, 0.0, %v2498
        %v2508 = vsel %vm2504, 0.0, %v2497
        %v2509 = vsel %vm2505, 0.0, %v2496
        %v2510 = vsel %vm2506, 0.0, %v2495
        %vm2511 = vcmp.eq.s32.totalorder %v2483, 3
        %vm2512 = vcmp.eq.s32.totalorder %v2484, 3
        %vm2513 = vcmp.eq.s32.totalorder %v2485, 3
        %vm2514 = vcmp.eq.s32.totalorder %v2486, 3
        %v2515 = vrot.slane %v2425, 1
        %v2516 = vrot.slane %v2428, 1
        %v2517 = vrot.slane %v2433, 1
        %v2518 = vrot.slane %v2436, 1
        %v2519 = vsel %vm1388, %v2517, %v2518
        %v2520 = vsel %vm1388, %v2516, %v2517
        %v2521 = vsel %vm1388, %v2515, %v2516
        %v2522 = vsel %vm1388, %v2518, %v2515
        %v2523 = vsel %vm2511, 1, 0
        %v2524 = vsel %vm2512, 1, 0
        %v2525 = vsel %vm2513, 1, 0
        %v2526 = vsel %vm2514, 1, 0
        %vm2527 = vcmp.eq.s32.totalorder %v2523, 1
        %vm2528 = vcmp.eq.s32.totalorder %v2524, 1
        %vm2529 = vcmp.eq.s32.totalorder %v2525, 1
        %vm2530 = vcmp.eq.s32.totalorder %v2526, 1
        %v2531 = vsel %vm2527, 0.0, %v2521
        %v2532 = vsel %vm2528, 0.0, %v2520
        %v2533 = vsel %vm2529, 0.0, %v2519
        %v2534 = vsel %vm2530, 0.0, %v2522
        %v2535 = vadd.f32 %v2507, %v2374
        %v2536 = vadd.f32 %v2508, %v2378
        %v2537 = vadd.f32 %v2509, %v2384
        %v2538 = vadd.f32 %v2510, %v2388
        %v2539 = vadd.f32 %v2535, %v2531
        %v2540 = vadd.f32 %v2536, %v2532
        %v2541 = vadd.f32 %v2537, %v2533
        %v2542 = vadd.f32 %v2538, %v2534
        %v2543 = vld [vmem:[%s7] sm:$0x1]
        %v2545 = vlaneseq
        %v2546 = vshrl.u32 %v2545, 7
        %v2547 = vsub.s32 0, %v2546
        %v2548 = vrot.slane %v2543, %v2547
        %v2550 = vadd.f32 %v2539, %v2548
        %v2551 = vadd.f32 %v2540, %v2548
        %v2552 = vadd.f32 %v2541, %v2548
        %v2553 = vadd.f32 %v2542, %v2548
        %v2554 = vmax.f32 %v2550, 0.0
        %v2555 = vmax.f32 %v2551, 0.0
        %v2556 = vmax.f32 %v2552, 0.0
        %v2557 = vmax.f32 %v2553, 0.0
        %v2558 = vrot.slane %v2554, 1
        %v2559 = vrot.slane %v2555, 1
        %v2560 = vrot.slane %v2556, 1
        %v2561 = vrot.slane %v2557, 1
        %v2562 = vsel %vm1388, %v2560, %v2561
        %v2563 = vsel %vm1388, %v2559, %v2560
        %v2564 = vsel %vm1388, %v2558, %v2559
        %v2565 = vsel %vm1388, %v2561, %v2558
        %v2566 = vmax.f32 %v2554, %v2564
        %v2567 = vmax.f32 %v2555, %v2563
        %v2568 = vmax.f32 %v2556, %v2562
        %v2569 = vmax.f32 %v2557, %v2565
        %2570 = vst [vmem:[#allocation4] sm:$0xff] %v2566
        %2571 = vst [vmem:[#allocation4 + $0x8] sm:$0xff] %v2567
        %2572 = vst [vmem:[#allocation4 + $0x10] sm:$0xff] %v2568
        %2573 = vst [vmem:[#allocation4 + $0x18] sm:$0xff] %v2569
        %v2574 = vld [vmem:[#allocation4] ss:$2 sm:$0xff]
        %s2575 = scalar_lea.vmem [#allocation4], 16
        %v2576 = vld [vmem:[%s2575] ss:$2 sm:$0xff]
        %v2577 = vrot.slane %v2574, 1
        %v2578 = vrot.slane %v2576, 1
        %v2579 = vsel %vm1388, %v2577, %v2578
        %v2580 = vsel %vm1388, %v2578, %v2577
        %v2581 = vmax.f32 %v2574, %v2579
        %v2582 = vmax.f32 %v2576, %v2580
        %2583 = vst [vmem:[#allocation4] sm:$0xff] %v2581
        %2584 = vst [vmem:[#allocation4 + $0x8] sm:$0xff] %v2582
        %v2585 = vld [vmem:[#allocation4] ss:$2 sm:$0xff]
        %v2586 = vpack.c.bf16 %v2585, %v2585
        %v2587 = vld [vmem:[#allocation10] sm:$0xf]
        %v2588 = vld [vmem:[#allocation10 + $0x4] sm:$0xf]
        %v2589 = vld [vmem:[#allocation10 + $0x8] sm:$0xf]
        %v2590 = vld [vmem:[#allocation10 + $0xc] sm:$0xf]
        %v2591 = vld [vmem:[#allocation10 + $0x10] sm:$0xf]
        %v2592 = vld [vmem:[#allocation10 + $0x14] sm:$0xf]
        %v2593 = vld [vmem:[#allocation10 + $0x18] sm:$0xf]
        %v2594 = vld [vmem:[#allocation10 + $0x1c] sm:$0xf]
        %v2595 = vld [vmem:[#allocation10 + $0x20] sm:$0xf]
        %v2596 = vld [vmem:[#allocation10 + $0x24] sm:$0xf]
        %v2597 = vld [vmem:[#allocation10 + $0x28] sm:$0xf]
        %v2598 = vld [vmem:[#allocation10 + $0x2c] sm:$0xf]
        %v2599 = vld [vmem:[#allocation10 + $0x30] sm:$0xf]
        %v2600 = vld [vmem:[#allocation10 + $0x34] sm:$0xf]
        %v2601 = vld [vmem:[#allocation10 + $0x38] sm:$0xf]
        %v2602 = vld [vmem:[#allocation10 + $0x3c] sm:$0xf]
        %v2603 = vld [vmem:[%s9] sm:$0x1]
        %v2605 = vlaneseq
        %v2606 = vshrl.u32 %v2605, 7
        %v2607 = vsub.s32 0, %v2606
        %v2608 = vrot.slane %v2603, %v2607
        %v2626 = vunpack.c.l.b16 %v2587
        %v2627 = vunpack.c.l.b16 %v2588
        %v2628 = vunpack.c.l.b16 %v2589
        %v2629 = vunpack.c.l.b16 %v2590
        %v2630 = vunpack.c.l.b16 %v2591
        %v2631 = vunpack.c.l.b16 %v2592
        %v2632 = vunpack.c.l.b16 %v2593
        %v2633 = vunpack.c.l.b16 %v2594
        %v2634 = vunpack.c.l.b16 %v2595
        %v2635 = vunpack.c.l.b16 %v2596
        %v2636 = vunpack.c.l.b16 %v2597
        %v2637 = vunpack.c.l.b16 %v2598
        %v2638 = vunpack.c.l.b16 %v2599
        %v2639 = vunpack.c.l.b16 %v2600
        %v2640 = vunpack.c.l.b16 %v2601
        %v2641 = vunpack.c.l.b16 %v2602
        %v2642 = vpack.c.b16 %v2627, %v2626
        %v2643 = vpack.c.b16 %v2629, %v2628
        %v2644 = vpack.c.b16 %v2631, %v2630
        %v2645 = vpack.c.b16 %v2633, %v2632
        %v2646 = vpack.c.b16 %v2635, %v2634
        %v2647 = vpack.c.b16 %v2637, %v2636
        %v2648 = vpack.c.b16 %v2639, %v2638
        %v2649 = vpack.c.b16 %v2641, %v2640
        %2658 = vmatprep.subr.bf16.mxu0 0
        %2659 = vmatpush1.bf16.msra.mxu0 %v2642
        %2660 = vmatprep.subr.bf16.mxu0 0
        %2661 = vmatpush1.bf16.msra.mxu0 %v2643
        %2662 = vmatprep.subr.bf16.mxu0 0
        %2663 = vmatpush1.bf16.msra.mxu0 %v2644
        %2664 = vmatprep.subr.bf16.mxu0 0
        %2665 = vmatpush1.bf16.msra.mxu0 %v2645
        %2666 = vmatprep.subr.bf16.mxu0 0
        %2667 = vmatpush1.bf16.msra.mxu0 %v2646
        %2668 = vmatprep.subr.bf16.mxu0 0
        %2669 = vmatpush1.bf16.msra.mxu0 %v2647
        %2670 = vmatprep.subr.bf16.mxu0 0
        %2671 = vmatpush1.bf16.msra.mxu0 %v2648
        %2672 = vmatprep.subr.bf16.mxu0 0
        %2673 = vmatpush1.bf16.msra.mxu0 %v2649
        %2674 = vmatprep.subr.bf16.mxu0 0
        %2675 = vmatpush1.bf16.msra.mxu0 0
        %2676 = vmatprep.subr.bf16.mxu0 0
        %2677 = vmatpush1.bf16.msra.mxu0 0
        %2678 = vmatprep.subr.bf16.mxu0 0
        %2679 = vmatpush1.bf16.msra.mxu0 0
        %2680 = vmatprep.subr.bf16.mxu0 0
        %2681 = vmatpush1.bf16.msra.mxu0 0
        %2682 = vmatprep.subr.bf16.mxu0 0
        %2683 = vmatpush1.bf16.msra.mxu0 0
        %2684 = vmatprep.subr.bf16.mxu0 0
        %2685 = vmatpush1.bf16.msra.mxu0 0
        %2686 = vmatprep.subr.bf16.mxu0 0
        %2687 = vmatpush1.bf16.msra.mxu0 0
        %2688 = vmatprep.subr.bf16.mxu0 0
        %2689 = vmatpush1.bf16.msra.mxu0 0
        %2690 = vmatprep.mubr.bf16.mxu0 0
        %2691 = vmatmul.mubr.bf16.gmra.mrb[0].mxu0 %v2586
        %v2692 = vpop.f32.mrb[0].mxu0
        %v2693 = vadd.f32 %v2608, %v2692
        %v2694 = vpop.f32.mrb[0].mxu0
        %v2695 = vpop.f32.mrb[0].mxu0
        %v2696 = vpop.f32.mrb[0].mxu0
        %2697 = vdwg.mxu0
        %2698 = vst [vmem:[%s397] sm:$0xff] %v2693
        %s2699 = sand.u32 %s249, 1
        %s2700 = scalar_lea.sflag [#allocation7], %s2699
        %s2701 = sand.u32 %s249, 1
        %s2702 = smul.addr %s2701, 8
        %s2703 = scalar_lea.vmem [#allocation11], %s2702
        // Predicated region
        $region73: #{tpu_custom_call.1} parent=59 // pred_check
          %p2704 = pneg %p259
        $region74: #{tpu_custom_call.1} parent=59 // pred_check_branch
          %2706 = sbr.rel (%p2704) target = $region76
        $region75: #{tpu_custom_call.1} parent=59 // pred_region
          %s2708 = ssub.s32 128, 128
          %2709 = vsyncadd %s2700, %s2708
          %s2710 = smul.addr %s26, 128
          %s2711 = scalar_lea.hbm %s10, %s2710
          %s2713 = sshll.u32 %s2703, 4
          %s2714 = int_to_ptr.vmem [resolvable:$true] %s2713
          %2716 = dma.vmem_to_hbm [thread:$0]  %s2714, 128, %s2711, %s2700
        $region76: #{tpu_custom_call.1} parent=59 // pred_fallthru
          _
      $region60: #{tpu_custom_call.1} parent=5 // pred_fallthru
        _
      %p2717 = scmp.le.s32.totalorder 2, %s21
      // Predicated region
      $region77: #{tpu_custom_call.1} parent=5 // pred_check
        %p2718 = pneg %p2717
      $region78: #{tpu_custom_call.1} parent=5 // pred_check_branch
        %2720 = sbr.rel (%p2718) target = $region80
      $region79: #{tpu_custom_call.1} parent=5 // pred_region
        %s2721 = ssub.s32 %s21, 2
        // Predicated region
        $region81: #{tpu_custom_call.1} parent=79 // pred_check
          %p2722 = pneg %p265
        $region82: #{tpu_custom_call.1} parent=79 // pred_check_branch
          %2724 = sbr.rel (%p2722) target = $region84
        $region83: #{tpu_custom_call.1} parent=79 // pred_region
          %s2725 = sand.u32 %s250, 1
          %s2726 = scalar_lea.sflag [#allocation7], %s2725
          %s2727 = sand.u32 %s250, 1
          %s2728 = smul.addr %s2727, 8
          %s2729 = scalar_lea.vmem [#allocation11], %s2728
          %2730 = dma.done %s2726, 128
        $region84: #{tpu_custom_call.1} parent=79 // pred_fallthru
          _
      $region80: #{tpu_custom_call.1} parent=5 // pred_fallthru
        _
    $region6: #{tpu_custom_call.1} parent=1 // loop_footer
      %s25 = sadd.s32 1, %s21
    $region7: #{tpu_custom_call.1} parent=1 // loop_footer_branch
      %20 = sbr.rel target = $region3
    $region8: #{tpu_custom_call.1} parent=1 // loop_exit
      _
    %2731 = vsyncpa [#allocation6], 1
    %s2732 = scalar_lea.sflag [#allocation6], 1
    %2733 = vsyncpa %s2732, 1
    %2734 = vsyncpa [#allocation9], 1
    %2735 = vsyncpa [#allocation7], 1
    %s2736 = scalar_lea.sflag [#allocation7], 1
    %2737 = vsyncpa %s2736, 1

</llo_original>
